<compile_context>
chip_gen: v5e
topology: v5e:2x2
jax: 0.10.0
libtpu: 0.0.40
codegen_flags: <defaults>
</compile_context>

<pallas_src>
import functools
import math

import jax
import jax.numpy as jnp
from jax import lax
from jax.experimental import pallas as pl
from jax.experimental.pallas import tpu as pltpu


# -----------------------------------------------------------------------------
# Fused kernel: one batch row per grid step.
# -----------------------------------------------------------------------------
def _fused_xception_kernel(x_ref, *refs, chans, buf_ch):
    n_layers = len(chans) - 1
    w_refs = refs[:n_layers]                  # (3*C_in, C_out) per layer
    sb_refs = refs[n_layers:2 * n_layers]     # (2, C_out): row0=scale, row1=shift
    r_ref = refs[2 * n_layers]                # (C_last, C_last*F) channel-expand
    p_ref = refs[2 * n_layers + 1]            # (L_last, C_last*F) tiled pool weights
    o_ref = refs[2 * n_layers + 2]            # (1, 1, C_last*F)
    buf = refs[2 * n_layers + 3]              # (L0+1, buf_ch) f32 scratch

    l_in = x_ref.shape[1]
    c0 = x_ref.shape[2]

    # Stage the zero-left-padded input: buf[i] == x_pad[i] (row 0 is the pad).
    buf[pl.ds(0, 1), :] = jnp.zeros((1, buf_ch), jnp.float32)
    buf[pl.ds(1, l_in), pl.ds(0, c0)] = x_ref[0].astype(jnp.float32)

    y = None
    c_in = c0
    for i in range(n_layers):
        c_out = chans[i + 1]
        l_out = l_in // 2
        # Stride-2 conv: out[l] uses padded rows buf[2l + k], k = 0, 1, 2.
        t0 = buf[pl.ds(0, l_out, 2), :][:, :c_in]
        t1 = buf[pl.ds(1, l_out, 2), :][:, :c_in]
        t2 = buf[pl.ds(2, l_out, 2), :][:, :c_in]
        lhs = jnp.concatenate([t0, t1, t2], axis=1)                 # (l_out, 3*c_in)
        acc = jnp.dot(lhs, w_refs[i][...], preferred_element_type=jnp.float32)
        sb = sb_refs[i][...]                                        # (2, c_out)
        y = jnp.maximum(acc * sb[0:1, :] + sb[1:2, :], 0.0)         # folded BN + ReLU
        if i + 1 < n_layers:
            # Becomes the next layer's padded input (row 0 stays zero).
            buf[pl.ds(1, l_out), pl.ds(0, c_out)] = y
        l_in, c_in = l_out, c_out

    # AdaptiveAvgPool1d + PyTorch-order flatten as one lane-dense row:
    #   out[c*F + f] = sum_l P[f, l] * y[l, c]
    expanded = jnp.dot(y, r_ref[...], preferred_element_type=jnp.float32)  # (L_last, C*F)
    out = jnp.sum(expanded * p_ref[...], axis=0, keepdims=True)            # (1, C*F)
    o_ref[0] = out.astype(o_ref.dtype)


# -----------------------------------------------------------------------------
# One-time parameter preparation (hoisted out of the forward path).
# -----------------------------------------------------------------------------
def _adaptive_pool_matrix(length, out_len, dtype=jnp.float32):
    """Exact PyTorch AdaptiveAvgPool1d averaging weights, shape (out_len, length)."""
    f = jnp.arange(out_len)
    l = jnp.arange(length)
    starts = (f * length) // out_len
    ends = ((f + 1) * length + out_len - 1) // out_len
    mask = (l[None, :] >= starts[:, None]) & (l[None, :] < ends[:, None])
    counts = (ends - starts).astype(dtype)
    return mask.astype(dtype) / counts[:, None]


def prepare_xception_params(params, seq_len, features_len, eps=1e-5):
    """Fold BN, stack conv taps, and build the pool/flatten matrices once."""
    ws, sbs = [], []
    for p in params:
        w = p["w"]  # (C_out, C_in, 3) torch layout
        w3 = jnp.concatenate([w[:, :, 0].T, w[:, :, 1].T, w[:, :, 2].T], axis=0)
        inv = p["gamma"] * lax.rsqrt(p["var"] + eps)
        sb = jnp.stack([inv, p["beta"] - p["mean"] * inv], axis=0)
        ws.append(w3.astype(jnp.float32))
        sbs.append(sb.astype(jnp.float32))
    n_layers = len(params)
    c_final = params[-1]["w"].shape[0]
    l_final = seq_len // (2 ** n_layers)
    out_w = c_final * features_len
    pool = _adaptive_pool_matrix(l_final, features_len, jnp.float32)   # (F, L_last), f32
    ptile = jnp.tile(pool.T, (1, c_final))                             # (L_last, C*F)
    r = (jnp.arange(out_w)[None, :] // features_len
         == jnp.arange(c_final)[:, None]).astype(jnp.float32)          # (C, C*F)
    return dict(w=tuple(ws), sb=tuple(sbs), r=r, ptile=ptile)


# -----------------------------------------------------------------------------
# Forward pass: a single fused pallas_call.
# -----------------------------------------------------------------------------
@jax.jit
def xception_regressor_forward(x_ncl, prep):
    """x_ncl: (B, C_in, L) PyTorch layout. prep: output of prepare_xception_params."""
    B, c0, L = x_ncl.shape
    ws, sbs = prep["w"], prep["sb"]
    n_layers = len(ws)
    chans = (c0,) + tuple(w.shape[1] for w in ws)
    out_width = prep["r"].shape[1]
    # TODO(synk): the fused kernel assumes every intermediate length is even
    # (seq_len % 2**n_layers == 0); odd lengths would need per-layer right pad.
    assert L % (2 ** n_layers) == 0, "seq_len must be divisible by 2**n_layers"
    assert ws[0].shape[0] == 3 * c0
    buf_ch = max(chans[:-1])

    x_blc = jnp.transpose(x_ncl, (0, 2, 1))   # channels-last (lane-dense) layout

    kernel = functools.partial(_fused_xception_kernel, chans=chans, buf_ch=buf_ch)

    in_specs = [pl.BlockSpec((1, L, c0), lambda b: (b, 0, 0))]
    in_specs += [pl.BlockSpec(w.shape, lambda b: (0, 0)) for w in ws]
    in_specs += [pl.BlockSpec(sb.shape, lambda b: (0, 0)) for sb in sbs]
    in_specs += [pl.BlockSpec(prep["r"].shape, lambda b: (0, 0)),
                 pl.BlockSpec(prep["ptile"].shape, lambda b: (0, 0))]

    out = pl.pallas_call(
        kernel,
        out_shape=jax.ShapeDtypeStruct((B, 1, out_width), x_ncl.dtype),
        grid_spec=pltpu.PrefetchScalarGridSpec(
            num_scalar_prefetch=0,
            grid=(B,),
            in_specs=in_specs,
            out_specs=pl.BlockSpec((1, 1, out_width), lambda b: (b, 0, 0)),
            scratch_shapes=[pltpu.VMEM((L + 1, buf_ch), jnp.float32)],
        ),
        compiler_params=pltpu.CompilerParams(
            dimension_semantics=("parallel",),
        ),
    )(x_blc, *ws, *sbs, prep["r"], prep["ptile"])
    return out.reshape(B, out_width)


# -----------------------------------------------------------------------------
# Pure-JAX reference for the correctness check
# -----------------------------------------------------------------------------
def _reference_forward(x_ncl, params, features_len, eps=1e-5):
    x = x_ncl
    for p in params:
        x = lax.conv_general_dilated(
            x, p["w"], window_strides=(2,), padding=[(1, 1)],
            dimension_numbers=("NCH", "OIH", "NCH"))
        inv = p["gamma"] / jnp.sqrt(p["var"] + eps)
        x = x * inv[None, :, None] + (p["beta"] - p["mean"] * inv)[None, :, None]
        x = jnp.maximum(x, 0.0)
    B, C, L = x.shape
    P = _adaptive_pool_matrix(L, features_len, jnp.float32)   # (F, L)
    x = jnp.einsum("bcl,fl->bcf", x, P)
    return x.reshape(B, -1)


# -----------------------------------------------------------------------------
if __name__ == "__main__":
    # Small config consistent with the module:
    #   input_channels=3, mid_channels=4, seq_len=256, features_len=4
    batch = 2
    input_channels = 3
    mid_channels = 4
    seq_len = 256
    features_len = 4

    chans = [input_channels, mid_channels, mid_channels * 2,
             mid_channels * 4, mid_channels * 8, mid_channels * 16]

    key = jax.random.PRNGKey(0)
    key, kx = jax.random.split(key)
    x = jax.random.normal(kx, (batch, input_channels, seq_len), jnp.float32)

    params = []
    for c_in, c_out in zip(chans[:-1], chans[1:]):
        key, kw, kg, kb, km, kv = jax.random.split(key, 6)
        bound = 1.0 / math.sqrt(c_in * 3)
        params.append(dict(
            w=jax.random.uniform(kw, (c_out, c_in, 3), jnp.float32, -bound, bound),
            gamma=jax.random.uniform(kg, (c_out,), jnp.float32, 0.5, 1.5),
            beta=jax.random.uniform(kb, (c_out,), jnp.float32, -0.1, 0.1),
            mean=jax.random.uniform(km, (c_out,), jnp.float32, -0.1, 0.1),
            var=jax.random.uniform(kv, (c_out,), jnp.float32, 0.5, 1.5),
        ))

    prep = prepare_xception_params(params, seq_len, features_len)
    out = xception_regressor_forward(x, prep)
    out = jax.block_until_ready(out)

    ref = _reference_forward(x, params, features_len)
    assert out.shape == (batch, chans[-1] * features_len), out.shape
    assert jnp.allclose(out, ref, atol=1e-4, rtol=1e-4), float(jnp.max(jnp.abs(out - ref)))

    print("KERNEL_OK")
</pallas_src>

<mosaic_0001>
module attributes {stable_mosaic.version = 11 : i64} {
  func.func @_fused_xception_kernel(%arg0: i32, %arg1: memref<1x256x3xf32, #tpu.memory_space<vmem>>, %arg2: memref<9x4xf32, #tpu.memory_space<vmem>>, %arg3: memref<12x8xf32, #tpu.memory_space<vmem>>, %arg4: memref<24x16xf32, #tpu.memory_space<vmem>>, %arg5: memref<48x32xf32, #tpu.memory_space<vmem>>, %arg6: memref<96x64xf32, #tpu.memory_space<vmem>>, %arg7: memref<2x4xf32, #tpu.memory_space<vmem>>, %arg8: memref<2x8xf32, #tpu.memory_space<vmem>>, %arg9: memref<2x16xf32, #tpu.memory_space<vmem>>, %arg10: memref<2x32xf32, #tpu.memory_space<vmem>>, %arg11: memref<2x64xf32, #tpu.memory_space<vmem>>, %arg12: memref<64x256xf32, #tpu.memory_space<vmem>>, %arg13: memref<8x256xf32, #tpu.memory_space<vmem>>, %arg14: memref<1x1x256xf32, #tpu.memory_space<vmem>>, %arg15: memref<257x32xf32, #tpu.memory_space<vmem>>) attributes {dimension_semantics = [#tpu.dimension_semantics<parallel>], iteration_bounds = array<i64: 2>, scalar_prefetch = 0 : i64, scratch_operands = 1 : i64, tpu.core_type = #tpu.core_type<tc>, window_params = [{transform_indices = @transform_0, window_bounds = array<i64: 1, 256, 3>}, {pipeline_mode = #tpu.pipeline_mode<synchronous>, transform_indices = @transform_1, window_bounds = array<i64: 9, 4>}, {pipeline_mode = #tpu.pipeline_mode<synchronous>, transform_indices = @transform_2, window_bounds = array<i64: 12, 8>}, {pipeline_mode = #tpu.pipeline_mode<synchronous>, transform_indices = @transform_3, window_bounds = array<i64: 24, 16>}, {pipeline_mode = #tpu.pipeline_mode<synchronous>, transform_indices = @transform_4, window_bounds = array<i64: 48, 32>}, {pipeline_mode = #tpu.pipeline_mode<synchronous>, transform_indices = @transform_5, window_bounds = array<i64: 96, 64>}, {pipeline_mode = #tpu.pipeline_mode<synchronous>, transform_indices = @transform_6, window_bounds = array<i64: 2, 4>}, {pipeline_mode = #tpu.pipeline_mode<synchronous>, transform_indices = @transform_7, window_bounds = array<i64: 2, 8>}, {pipeline_mode = #tpu.pipeline_mode<synchronous>, transform_indices = @transform_8, window_bounds = array<i64: 2, 16>}, {pipeline_mode = #tpu.pipeline_mode<synchronous>, transform_indices = @transform_9, window_bounds = array<i64: 2, 32>}, {pipeline_mode = #tpu.pipeline_mode<synchronous>, transform_indices = @transform_10, window_bounds = array<i64: 2, 64>}, {pipeline_mode = #tpu.pipeline_mode<synchronous>, transform_indices = @transform_11, window_bounds = array<i64: 64, 256>}, {pipeline_mode = #tpu.pipeline_mode<synchronous>, transform_indices = @transform_12, window_bounds = array<i64: 8, 256>}, {transform_indices = @transform_13, window_bounds = array<i64: 1, 1, 256>}]} {
    %cst = arith.constant 0.000000e+00 : f32
    %0 = vector.broadcast %cst : f32 to vector<1x32xf32>
    %c0 = arith.constant 0 : index
    %c0_0 = arith.constant 0 : index
    %1 = vector.load %arg15[%c0, %c0_0] : memref<257x32xf32, #tpu.memory_space<vmem>>, vector<1x32xf32>
    tpu.vector_store %arg15[%c0, %c0_0], %0 {strides = array<i32>} : memref<257x32xf32, #tpu.memory_space<vmem>>, vector<1x32xf32>,
    %c0_1 = arith.constant 0 : index
    %c0_2 = arith.constant 0 : index
    %c0_3 = arith.constant 0 : index
    %2 = vector.load %arg1[%c0_1, %c0_2, %c0_3] : memref<1x256x3xf32, #tpu.memory_space<vmem>>, vector<1x256x3xf32>
    %3 = vector.shape_cast %2 : vector<1x256x3xf32> to vector<256x3xf32>
    %c1 = arith.constant 1 : index
    %c0_4 = arith.constant 0 : index
    %4 = vector.load %arg15[%c1, %c0_4] : memref<257x32xf32, #tpu.memory_space<vmem>>, vector<256x3xf32>
    tpu.vector_store %arg15[%c1, %c0_4], %3 {strides = array<i32>} : memref<257x32xf32, #tpu.memory_space<vmem>>, vector<256x3xf32>,
    %c0_5 = arith.constant 0 : index
    %c0_6 = arith.constant 0 : index
    %5 = tpu.strided_load %arg15[%c0_5, %c0_6] {strides = array<i32: 2, 1>} : memref<257x32xf32, #tpu.memory_space<vmem>>, vector<128x32xf32>
    %6 = vector.extract_strided_slice %5 {offsets = [0, 0], sizes = [128, 3], strides = [1, 1]} : vector<128x32xf32> to vector<128x3xf32>
    %c1_7 = arith.constant 1 : index
    %c0_8 = arith.constant 0 : index
    %7 = tpu.strided_load %arg15[%c1_7, %c0_8] {strides = array<i32: 2, 1>} : memref<257x32xf32, #tpu.memory_space<vmem>>, vector<128x32xf32>
    %8 = vector.extract_strided_slice %7 {offsets = [0, 0], sizes = [128, 3], strides = [1, 1]} : vector<128x32xf32> to vector<128x3xf32>
    %c2 = arith.constant 2 : index
    %c0_9 = arith.constant 0 : index
    %9 = tpu.strided_load %arg15[%c2, %c0_9] {strides = array<i32: 2, 1>} : memref<257x32xf32, #tpu.memory_space<vmem>>, vector<128x32xf32>
    %10 = vector.extract_strided_slice %9 {offsets = [0, 0], sizes = [128, 3], strides = [1, 1]} : vector<128x32xf32> to vector<128x3xf32>
    %11 = tpu.concatenate %6, %8, %10 in 1 : vector<128x3xf32>, vector<128x3xf32>, vector<128x3xf32> -> vector<128x9xf32>
    %c0_10 = arith.constant 0 : index
    %c0_11 = arith.constant 0 : index
    %12 = vector.load %arg2[%c0_10, %c0_11] : memref<9x4xf32, #tpu.memory_space<vmem>>, vector<9x4xf32>
    %cst_12 = arith.constant dense<0.000000e+00> : vector<128x4xf32>
    %13 = tpu.matmul %11, %12, %cst_12 {dimension_numbers = #tpu.dot_dimension_numbers<[1], [0], [0], [1], [0, 0, 1, 1], [], []>} : vector<128x9xf32>, vector<9x4xf32>, vector<128x4xf32> -> vector<128x4xf32>
    %c0_13 = arith.constant 0 : index
    %c0_14 = arith.constant 0 : index
    %14 = vector.load %arg7[%c0_13, %c0_14] : memref<2x4xf32, #tpu.memory_space<vmem>>, vector<2x4xf32>
    %15 = vector.extract_strided_slice %14 {offsets = [0, 0], sizes = [1, 4], strides = [1, 1]} : vector<2x4xf32> to vector<1x4xf32>
    %16 = vector.broadcast %15 : vector<1x4xf32> to vector<128x4xf32>
    %17 = arith.mulf %13, %16 : vector<128x4xf32>
    %18 = vector.extract_strided_slice %14 {offsets = [1, 0], sizes = [1, 4], strides = [1, 1]} : vector<2x4xf32> to vector<1x4xf32>
    %19 = vector.broadcast %18 : vector<1x4xf32> to vector<128x4xf32>
    %20 = arith.addf %17, %19 : vector<128x4xf32>
    %cst_15 = arith.constant 0.000000e+00 : f32
    %21 = vector.broadcast %cst_15 : f32 to vector<128x4xf32>
    %22 = arith.maximumf %20, %21 : vector<128x4xf32>
    %c1_16 = arith.constant 1 : index
    %c0_17 = arith.constant 0 : index
    %23 = vector.load %arg15[%c1_16, %c0_17] : memref<257x32xf32, #tpu.memory_space<vmem>>, vector<128x4xf32>
    tpu.vector_store %arg15[%c1_16, %c0_17], %22 {strides = array<i32>} : memref<257x32xf32, #tpu.memory_space<vmem>>, vector<128x4xf32>,
    %c0_18 = arith.constant 0 : index
    %c0_19 = arith.constant 0 : index
    %24 = tpu.strided_load %arg15[%c0_18, %c0_19] {strides = array<i32: 2, 1>} : memref<257x32xf32, #tpu.memory_space<vmem>>, vector<64x32xf32>
    %25 = vector.extract_strided_slice %24 {offsets = [0, 0], sizes = [64, 4], strides = [1, 1]} : vector<64x32xf32> to vector<64x4xf32>
    %c1_20 = arith.constant 1 : index
    %c0_21 = arith.constant 0 : index
    %26 = tpu.strided_load %arg15[%c1_20, %c0_21] {strides = array<i32: 2, 1>} : memref<257x32xf32, #tpu.memory_space<vmem>>, vector<64x32xf32>
    %27 = vector.extract_strided_slice %26 {offsets = [0, 0], sizes = [64, 4], strides = [1, 1]} : vector<64x32xf32> to vector<64x4xf32>
    %c2_22 = arith.constant 2 : index
    %c0_23 = arith.constant 0 : index
    %28 = tpu.strided_load %arg15[%c2_22, %c0_23] {strides = array<i32: 2, 1>} : memref<257x32xf32, #tpu.memory_space<vmem>>, vector<64x32xf32>
    %29 = vector.extract_strided_slice %28 {offsets = [0, 0], sizes = [64, 4], strides = [1, 1]} : vector<64x32xf32> to vector<64x4xf32>
    %30 = tpu.concatenate %25, %27, %29 in 1 : vector<64x4xf32>, vector<64x4xf32>, vector<64x4xf32> -> vector<64x12xf32>
    %c0_24 = arith.constant 0 : index
    %c0_25 = arith.constant 0 : index
    %31 = vector.load %arg3[%c0_24, %c0_25] : memref<12x8xf32, #tpu.memory_space<vmem>>, vector<12x8xf32>
    %cst_26 = arith.constant dense<0.000000e+00> : vector<64x8xf32>
    %32 = tpu.matmul %30, %31, %cst_26 {dimension_numbers = #tpu.dot_dimension_numbers<[1], [0], [0], [1], [0, 0, 1, 1], [], []>} : vector<64x12xf32>, vector<12x8xf32>, vector<64x8xf32> -> vector<64x8xf32>
    %c0_27 = arith.constant 0 : index
    %c0_28 = arith.constant 0 : index
    %33 = vector.load %arg8[%c0_27, %c0_28] : memref<2x8xf32, #tpu.memory_space<vmem>>, vector<2x8xf32>
    %34 = vector.extract_strided_slice %33 {offsets = [0, 0], sizes = [1, 8], strides = [1, 1]} : vector<2x8xf32> to vector<1x8xf32>
    %35 = vector.broadcast %34 : vector<1x8xf32> to vector<64x8xf32>
    %36 = arith.mulf %32, %35 : vector<64x8xf32>
    %37 = vector.extract_strided_slice %33 {offsets = [1, 0], sizes = [1, 8], strides = [1, 1]} : vector<2x8xf32> to vector<1x8xf32>
    %38 = vector.broadcast %37 : vector<1x8xf32> to vector<64x8xf32>
    %39 = arith.addf %36, %38 : vector<64x8xf32>
    %cst_29 = arith.constant 0.000000e+00 : f32
    %40 = vector.broadcast %cst_29 : f32 to vector<64x8xf32>
    %41 = arith.maximumf %39, %40 : vector<64x8xf32>
    %c1_30 = arith.constant 1 : index
    %c0_31 = arith.constant 0 : index
    %42 = vector.load %arg15[%c1_30, %c0_31] : memref<257x32xf32, #tpu.memory_space<vmem>>, vector<64x8xf32>
    tpu.vector_store %arg15[%c1_30, %c0_31], %41 {strides = array<i32>} : memref<257x32xf32, #tpu.memory_space<vmem>>, vector<64x8xf32>,
    %c0_32 = arith.constant 0 : index
    %c0_33 = arith.constant 0 : index
    %43 = tpu.strided_load %arg15[%c0_32, %c0_33] {strides = array<i32: 2, 1>} : memref<257x32xf32, #tpu.memory_space<vmem>>, vector<32x32xf32>
    %44 = vector.extract_strided_slice %43 {offsets = [0, 0], sizes = [32, 8], strides = [1, 1]} : vector<32x32xf32> to vector<32x8xf32>
    %c1_34 = arith.constant 1 : index
    %c0_35 = arith.constant 0 : index
    %45 = tpu.strided_load %arg15[%c1_34, %c0_35] {strides = array<i32: 2, 1>} : memref<257x32xf32, #tpu.memory_space<vmem>>, vector<32x32xf32>
    %46 = vector.extract_strided_slice %45 {offsets = [0, 0], sizes = [32, 8], strides = [1, 1]} : vector<32x32xf32> to vector<32x8xf32>
    %c2_36 = arith.constant 2 : index
    %c0_37 = arith.constant 0 : index
    %47 = tpu.strided_load %arg15[%c2_36, %c0_37] {strides = array<i32: 2, 1>} : memref<257x32xf32, #tpu.memory_space<vmem>>, vector<32x32xf32>
    %48 = vector.extract_strided_slice %47 {offsets = [0, 0], sizes = [32, 8], strides = [1, 1]} : vector<32x32xf32> to vector<32x8xf32>
    %49 = tpu.concatenate %44, %46, %48 in 1 : vector<32x8xf32>, vector<32x8xf32>, vector<32x8xf32> -> vector<32x24xf32>
    %c0_38 = arith.constant 0 : index
    %c0_39 = arith.constant 0 : index
    %50 = vector.load %arg4[%c0_38, %c0_39] : memref<24x16xf32, #tpu.memory_space<vmem>>, vector<24x16xf32>
    %cst_40 = arith.constant dense<0.000000e+00> : vector<32x16xf32>
    %51 = tpu.matmul %49, %50, %cst_40 {dimension_numbers = #tpu.dot_dimension_numbers<[1], [0], [0], [1], [0, 0, 1, 1], [], []>} : vector<32x24xf32>, vector<24x16xf32>, vector<32x16xf32> -> vector<32x16xf32>
    %c0_41 = arith.constant 0 : index
    %c0_42 = arith.constant 0 : index
    %52 = vector.load %arg9[%c0_41, %c0_42] : memref<2x16xf32, #tpu.memory_space<vmem>>, vector<2x16xf32>
    %53 = vector.extract_strided_slice %52 {offsets = [0, 0], sizes = [1, 16], strides = [1, 1]} : vector<2x16xf32> to vector<1x16xf32>
    %54 = vector.broadcast %53 : vector<1x16xf32> to vector<32x16xf32>
    %55 = arith.mulf %51, %54 : vector<32x16xf32>
    %56 = vector.extract_strided_slice %52 {offsets = [1, 0], sizes = [1, 16], strides = [1, 1]} : vector<2x16xf32> to vector<1x16xf32>
    %57 = vector.broadcast %56 : vector<1x16xf32> to vector<32x16xf32>
    %58 = arith.addf %55, %57 : vector<32x16xf32>
    %cst_43 = arith.constant 0.000000e+00 : f32
    %59 = vector.broadcast %cst_43 : f32 to vector<32x16xf32>
    %60 = arith.maximumf %58, %59 : vector<32x16xf32>
    %c1_44 = arith.constant 1 : index
    %c0_45 = arith.constant 0 : index
    %61 = vector.load %arg15[%c1_44, %c0_45] : memref<257x32xf32, #tpu.memory_space<vmem>>, vector<32x16xf32>
    tpu.vector_store %arg15[%c1_44, %c0_45], %60 {strides = array<i32>} : memref<257x32xf32, #tpu.memory_space<vmem>>, vector<32x16xf32>,
    %c0_46 = arith.constant 0 : index
    %c0_47 = arith.constant 0 : index
    %62 = tpu.strided_load %arg15[%c0_46, %c0_47] {strides = array<i32: 2, 1>} : memref<257x32xf32, #tpu.memory_space<vmem>>, vector<16x32xf32>
    %63 = vector.extract_strided_slice %62 {offsets = [0, 0], sizes = [16, 16], strides = [1, 1]} : vector<16x32xf32> to vector<16x16xf32>
    %c1_48 = arith.constant 1 : index
    %c0_49 = arith.constant 0 : index
    %64 = tpu.strided_load %arg15[%c1_48, %c0_49] {strides = array<i32: 2, 1>} : memref<257x32xf32, #tpu.memory_space<vmem>>, vector<16x32xf32>
    %65 = vector.extract_strided_slice %64 {offsets = [0, 0], sizes = [16, 16], strides = [1, 1]} : vector<16x32xf32> to vector<16x16xf32>
    %c2_50 = arith.constant 2 : index
    %c0_51 = arith.constant 0 : index
    %66 = tpu.strided_load %arg15[%c2_50, %c0_51] {strides = array<i32: 2, 1>} : memref<257x32xf32, #tpu.memory_space<vmem>>, vector<16x32xf32>
    %67 = vector.extract_strided_slice %66 {offsets = [0, 0], sizes = [16, 16], strides = [1, 1]} : vector<16x32xf32> to vector<16x16xf32>
    %68 = tpu.concatenate %63, %65, %67 in 1 : vector<16x16xf32>, vector<16x16xf32>, vector<16x16xf32> -> vector<16x48xf32>
    %c0_52 = arith.constant 0 : index
    %c0_53 = arith.constant 0 : index
    %69 = vector.load %arg5[%c0_52, %c0_53] : memref<48x32xf32, #tpu.memory_space<vmem>>, vector<48x32xf32>
    %cst_54 = arith.constant dense<0.000000e+00> : vector<16x32xf32>
    %70 = tpu.matmul %68, %69, %cst_54 {dimension_numbers = #tpu.dot_dimension_numbers<[1], [0], [0], [1], [0, 0, 1, 1], [], []>} : vector<16x48xf32>, vector<48x32xf32>, vector<16x32xf32> -> vector<16x32xf32>
    %c0_55 = arith.constant 0 : index
    %c0_56 = arith.constant 0 : index
    %71 = vector.load %arg10[%c0_55, %c0_56] : memref<2x32xf32, #tpu.memory_space<vmem>>, vector<2x32xf32>
    %72 = vector.extract_strided_slice %71 {offsets = [0, 0], sizes = [1, 32], strides = [1, 1]} : vector<2x32xf32> to vector<1x32xf32>
    %73 = vector.broadcast %72 : vector<1x32xf32> to vector<16x32xf32>
    %74 = arith.mulf %70, %73 : vector<16x32xf32>
    %75 = vector.extract_strided_slice %71 {offsets = [1, 0], sizes = [1, 32], strides = [1, 1]} : vector<2x32xf32> to vector<1x32xf32>
    %76 = vector.broadcast %75 : vector<1x32xf32> to vector<16x32xf32>
    %77 = arith.addf %74, %76 : vector<16x32xf32>
    %cst_57 = arith.constant 0.000000e+00 : f32
    %78 = vector.broadcast %cst_57 : f32 to vector<16x32xf32>
    %79 = arith.maximumf %77, %78 : vector<16x32xf32>
    %c1_58 = arith.constant 1 : index
    %c0_59 = arith.constant 0 : index
    %80 = vector.load %arg15[%c1_58, %c0_59] : memref<257x32xf32, #tpu.memory_space<vmem>>, vector<16x32xf32>
    tpu.vector_store %arg15[%c1_58, %c0_59], %79 {strides = array<i32>} : memref<257x32xf32, #tpu.memory_space<vmem>>, vector<16x32xf32>,
    %c0_60 = arith.constant 0 : index
    %c0_61 = arith.constant 0 : index
    %81 = tpu.strided_load %arg15[%c0_60, %c0_61] {strides = array<i32: 2, 1>} : memref<257x32xf32, #tpu.memory_space<vmem>>, vector<8x32xf32>
    %c1_62 = arith.constant 1 : index
    %c0_63 = arith.constant 0 : index
    %82 = tpu.strided_load %arg15[%c1_62, %c0_63] {strides = array<i32: 2, 1>} : memref<257x32xf32, #tpu.memory_space<vmem>>, vector<8x32xf32>
    %c2_64 = arith.constant 2 : index
    %c0_65 = arith.constant 0 : index
    %83 = tpu.strided_load %arg15[%c2_64, %c0_65] {strides = array<i32: 2, 1>} : memref<257x32xf32, #tpu.memory_space<vmem>>, vector<8x32xf32>
    %84 = tpu.concatenate %81, %82, %83 in 1 : vector<8x32xf32>, vector<8x32xf32>, vector<8x32xf32> -> vector<8x96xf32>
    %c0_66 = arith.constant 0 : index
    %c0_67 = arith.constant 0 : index
    %85 = vector.load %arg6[%c0_66, %c0_67] : memref<96x64xf32, #tpu.memory_space<vmem>>, vector<96x64xf32>
    %cst_68 = arith.constant dense<0.000000e+00> : vector<8x64xf32>
    %86 = tpu.matmul %84, %85, %cst_68 {dimension_numbers = #tpu.dot_dimension_numbers<[1], [0], [0], [1], [0, 0, 1, 1], [], []>} : vector<8x96xf32>, vector<96x64xf32>, vector<8x64xf32> -> vector<8x64xf32>
    %c0_69 = arith.constant 0 : index
    %c0_70 = arith.constant 0 : index
    %87 = vector.load %arg11[%c0_69, %c0_70] : memref<2x64xf32, #tpu.memory_space<vmem>>, vector<2x64xf32>
    %88 = vector.extract_strided_slice %87 {offsets = [0, 0], sizes = [1, 64], strides = [1, 1]} : vector<2x64xf32> to vector<1x64xf32>
    %89 = vector.broadcast %88 : vector<1x64xf32> to vector<8x64xf32>
    %90 = arith.mulf %86, %89 : vector<8x64xf32>
    %91 = vector.extract_strided_slice %87 {offsets = [1, 0], sizes = [1, 64], strides = [1, 1]} : vector<2x64xf32> to vector<1x64xf32>
    %92 = vector.broadcast %91 : vector<1x64xf32> to vector<8x64xf32>
    %93 = arith.addf %90, %92 : vector<8x64xf32>
    %cst_71 = arith.constant 0.000000e+00 : f32
    %94 = vector.broadcast %cst_71 : f32 to vector<8x64xf32>
    %95 = arith.maximumf %93, %94 : vector<8x64xf32>
    %c0_72 = arith.constant 0 : index
    %c0_73 = arith.constant 0 : index
    %96 = vector.load %arg12[%c0_72, %c0_73] : memref<64x256xf32, #tpu.memory_space<vmem>>, vector<64x256xf32>
    %cst_74 = arith.constant dense<0.000000e+00> : vector<8x256xf32>
    %97 = tpu.matmul %95, %96, %cst_74 {dimension_numbers = #tpu.dot_dimension_numbers<[1], [0], [0], [1], [0, 0, 1, 1], [], []>} : vector<8x64xf32>, vector<64x256xf32>, vector<8x256xf32> -> vector<8x256xf32>
    %c0_75 = arith.constant 0 : index
    %c0_76 = arith.constant 0 : index
    %98 = vector.load %arg13[%c0_75, %c0_76] : memref<8x256xf32, #tpu.memory_space<vmem>>, vector<8x256xf32>
    %99 = arith.mulf %97, %98 : vector<8x256xf32>
    %cst_77 = arith.constant dense<0.000000e+00> : vector<256xf32>
    %100 = vector.multi_reduction <add>, %99, %cst_77 [0] : vector<8x256xf32> to vector<256xf32>
    %101 = vector.shape_cast %100 : vector<256xf32> to vector<1x256xf32>
    %c0_78 = arith.constant 0 : index
    %c0_79 = arith.constant 0 : index
    %c0_80 = arith.constant 0 : index
    %102 = vector.load %arg14[%c0_78, %c0_79, %c0_80] : memref<1x1x256xf32, #tpu.memory_space<vmem>>, vector<1x1x256xf32>
    %103 = vector.shape_cast %102 : vector<1x1x256xf32> to vector<1x256xf32>
    %104 = vector.shape_cast %101 : vector<1x256xf32> to vector<1x1x256xf32>
    tpu.vector_store %arg14[%c0_78, %c0_79, %c0_80], %104 {strides = array<i32>} : memref<1x1x256xf32, #tpu.memory_space<vmem>>, vector<1x1x256xf32>,
    return
  }
  func.func @transform_0(%arg0: i32) -> (i32, i32, i32) {
    %c0_i32 = arith.constant 0 : i32
    %c0_i32_0 = arith.constant 0 : i32
    %c0_i32_1 = arith.constant 0 : i32
    return %arg0, %c0_i32, %c0_i32_0 : i32, i32, i32
  }
  func.func @transform_1(%arg0: i32) -> (i32, i32) {
    %c0_i32 = arith.constant 0 : i32
    %c0_i32_0 = arith.constant 0 : i32
    %c0_i32_1 = arith.constant 0 : i32
    return %c0_i32, %c0_i32_0 : i32, i32
  }
  func.func @transform_2(%arg0: i32) -> (i32, i32) {
    %c0_i32 = arith.constant 0 : i32
    %c0_i32_0 = arith.constant 0 : i32
    %c0_i32_1 = arith.constant 0 : i32
    return %c0_i32, %c0_i32_0 : i32, i32
  }
  func.func @transform_3(%arg0: i32) -> (i32, i32) {
    %c0_i32 = arith.constant 0 : i32
    %c0_i32_0 = arith.constant 0 : i32
    %c0_i32_1 = arith.constant 0 : i32
    return %c0_i32, %c0_i32_0 : i32, i32
  }
  func.func @transform_4(%arg0: i32) -> (i32, i32) {
    %c0_i32 = arith.constant 0 : i32
    %c0_i32_0 = arith.constant 0 : i32
    %c0_i32_1 = arith.constant 0 : i32
    return %c0_i32, %c0_i32_0 : i32, i32
  }
  func.func @transform_5(%arg0: i32) -> (i32, i32) {
    %c0_i32 = arith.constant 0 : i32
    %c0_i32_0 = arith.constant 0 : i32
    %c0_i32_1 = arith.constant 0 : i32
    return %c0_i32, %c0_i32_0 : i32, i32
  }
  func.func @transform_6(%arg0: i32) -> (i32, i32) {
    %c0_i32 = arith.constant 0 : i32
    %c0_i32_0 = arith.constant 0 : i32
    %c0_i32_1 = arith.constant 0 : i32
    return %c0_i32, %c0_i32_0 : i32, i32
  }
  func.func @transform_7(%arg0: i32) -> (i32, i32) {
    %c0_i32 = arith.constant 0 : i32
    %c0_i32_0 = arith.constant 0 : i32
    %c0_i32_1 = arith.constant 0 : i32
    return %c0_i32, %c0_i32_0 : i32, i32
  }
  func.func @transform_8(%arg0: i32) -> (i32, i32) {
    %c0_i32 = arith.constant 0 : i32
    %c0_i32_0 = arith.constant 0 : i32
    %c0_i32_1 = arith.constant 0 : i32
    return %c0_i32, %c0_i32_0 : i32, i32
  }
  func.func @transform_9(%arg0: i32) -> (i32, i32) {
    %c0_i32 = arith.constant 0 : i32
    %c0_i32_0 = arith.constant 0 : i32
    %c0_i32_1 = arith.constant 0 : i32
    return %c0_i32, %c0_i32_0 : i32, i32
  }
  func.func @transform_10(%arg0: i32) -> (i32, i32) {
    %c0_i32 = arith.constant 0 : i32
    %c0_i32_0 = arith.constant 0 : i32
    %c0_i32_1 = arith.constant 0 : i32
    return %c0_i32, %c0_i32_0 : i32, i32
  }
  func.func @transform_11(%arg0: i32) -> (i32, i32) {
    %c0_i32 = arith.constant 0 : i32
    %c0_i32_0 = arith.constant 0 : i32
    %c0_i32_1 = arith.constant 0 : i32
    return %c0_i32, %c0_i32_0 : i32, i32
  }
  func.func @transform_12(%arg0: i32) -> (i32, i32) {
    %c0_i32 = arith.constant 0 : i32
    %c0_i32_0 = arith.constant 0 : i32
    %c0_i32_1 = arith.constant 0 : i32
    return %c0_i32, %c0_i32_0 : i32, i32
  }
  func.func @transform_13(%arg0: i32) -> (i32, i32, i32) {
    %c0_i32 = arith.constant 0 : i32
    %c0_i32_0 = arith.constant 0 : i32
    %c0_i32_1 = arith.constant 0 : i32
    return %arg0, %c0_i32, %c0_i32_0 : i32, i32, i32
  }
}

</mosaic_0001>

<llo_original>
// kernel: xception_regressor_forward.1
$region0: #{xception_regressor_forward.1}
  #allocation0 [shape = 'u32[]', space=smem, size = 0x4, offset = 0x4, fixed_abs, tag = 'smem constant byte address 0x4 - core index']
  #allocation1 [shape = 'u32[72,128]{1,0:T(1,128)}', space=vmem, size = 0x9000, scoped, tag = 'internal scratch']
  #allocation2 [shape = 'f32[257,32]{1,0:T(8,128)}', space=vmem, size = 0x21000, scoped, tag = 'scratch operand']
  %s0 = inlined_call_operand.vmem [shape: f32[2,256,3], index: 0, kind: input, shape index: {}]
  %s1 = inlined_call_operand.vmem [shape: f32[9,4], index: 1, kind: input, shape index: {}]
  %s2 = inlined_call_operand.vmem [shape: f32[12,8], index: 2, kind: input, shape index: {}]
  %s3 = inlined_call_operand.vmem [shape: f32[24,16], index: 3, kind: input, shape index: {}]
  %s4 = inlined_call_operand.vmem [shape: f32[48,32], index: 4, kind: input, shape index: {}]
  %s5 = inlined_call_operand.vmem [shape: f32[96,64], index: 5, kind: input, shape index: {}]
  %s6 = inlined_call_operand.vmem [shape: f32[2,4], index: 6, kind: input, shape index: {}]
  %s7 = inlined_call_operand.vmem [shape: f32[2,8], index: 7, kind: input, shape index: {}]
  %s8 = inlined_call_operand.vmem [shape: f32[2,16], index: 8, kind: input, shape index: {}]
  %s9 = inlined_call_operand.vmem [shape: f32[2,32], index: 9, kind: input, shape index: {}]
  %s10 = inlined_call_operand.vmem [shape: f32[2,64], index: 10, kind: input, shape index: {}]
  %s11 = inlined_call_operand.vmem [shape: f32[64,256], index: 11, kind: input, shape index: {}]
  %s12 = inlined_call_operand.vmem [shape: f32[8,256], index: 12, kind: input, shape index: {}]
  %s13 = inlined_call_operand.vmem [shape: f32[2,1,256], index: 13, kind: output, shape index: {}]
  %s14 = sld [smem:[#allocation0]]
  $region85: #{xception_regressor_forward.1} parent=0
    _
  %s16 = ssub.s32 1, %s14
  %s17 = scalar_select 0, %s16, %s14
  loop: start=0, step=1, limit=4
  $region2: #{xception_regressor_forward.1} parent=0 // loop_pre_header
    _
  $region3: #{xception_regressor_forward.1} parent=0 // loop_header
    %s19 = sphi 0, %s23
    %p20 = scmp.ge.s32.totalorder %s19, 4
    %s29 = sphi 0, %s31
    %s32 = sphi 0, %s29
    %s33 = sphi 0, %s32
    %s49 = sphi 0, %s33
    %s53 = sphi 0, %s53
    %s55 = sphi 0, %s53
    %s56 = sphi 0, %s55
    %s70 = sphi 0, %s56
    %s74 = sphi 0, %s74
    %s76 = sphi 0, %s74
    %s77 = sphi 0, %s76
    %s91 = sphi 0, %s77
    %s95 = sphi 0, %s95
    %s97 = sphi 0, %s95
    %s98 = sphi 0, %s97
    %s112 = sphi 0, %s98
    %s116 = sphi 0, %s116
    %s118 = sphi 0, %s116
    %s119 = sphi 0, %s118
    %s133 = sphi 0, %s119
    %s137 = sphi 0, %s137
    %s139 = sphi 0, %s137
    %s140 = sphi 0, %s139
    %s154 = sphi 0, %s140
    %s158 = sphi 0, %s158
    %s160 = sphi 0, %s158
    %s161 = sphi 0, %s160
    %s175 = sphi 0, %s161
    %s179 = sphi 0, %s179
    %s181 = sphi 0, %s179
    %s182 = sphi 0, %s181
    %s196 = sphi 0, %s182
    %s200 = sphi 0, %s200
    %s202 = sphi 0, %s200
    %s203 = sphi 0, %s202
    %s217 = sphi 0, %s203
    %s221 = sphi 0, %s221
    %s223 = sphi 0, %s221
    %s224 = sphi 0, %s223
    %s238 = sphi 0, %s224
    %s242 = sphi 0, %s242
    %s244 = sphi 0, %s242
    %s245 = sphi 0, %s244
    %s259 = sphi 0, %s245
    %s263 = sphi 0, %s263
    %s265 = sphi 0, %s263
    %s266 = sphi 0, %s265
    %s280 = sphi 0, %s266
    %s284 = sphi 0, %s284
    %s286 = sphi 0, %s284
    %s287 = sphi 0, %s286
    %s301 = sphi 0, %s287
    %s307 = sphi 0, %s309
    %s310 = sphi 0, %s307
    %s311 = sphi 0, %s310
    %s327 = sphi 0, %s311
  $region4: #{xception_regressor_forward.1} parent=0 // loop_header_branch
    %22 = sbr.rel (%p20) target = $region8
  $region5: #{xception_regressor_forward.1} parent=0 // loop_body
    %s24 = ssub.s32 %s19, 1
    %s25 = ssub.s32 %s19, 2
    %s26 = sadd.s32 %s19, 1
    %s27 = ssub.s32 %s19, %s26
    %p28 = scmp.eq.s32.totalorder %s27, 0
    %s30 = sadd.s32 %s29, 1
    %s31 = scalar_select %p28, %s29, %s30
    %p34 = pneg %p28
    %p35 = scmp.eq.s32.totalorder %s19, 1
    %p36 = por %p34, %p35
    %p37 = scmp.ne.s32.totalorder %s29, %s32
    %p38 = scmp.eq.s32.totalorder %s19, 0
    %p39 = por %p37, %p38
    %p40 = scmp.ne.s32.totalorder %s29, %s32
    %p41 = scmp.eq.s32.totalorder %s24, 1
    %p42 = por %p40, %p41
    %p43 = scmp.ne.s32.totalorder %s32, %s33
    %p44 = scmp.eq.s32.totalorder %s24, 0
    %p45 = por %p43, %p44
    %p46 = scmp.ne.s32.totalorder %s32, %s33
    %p47 = scmp.eq.s32.totalorder %s25, 1
    %p48 = por %p46, %p47
    %p50 = scmp.ne.s32.totalorder %s33, %s49
    %p51 = scmp.eq.s32.totalorder %s25, 0
    %p52 = por %p50, %p51
    %s54 = sadd.s32 %s53, 1
    %p57 = scmp.eq.s32.totalorder %s19, 1
    %p58 = scmp.ne.s32.totalorder %s53, %s55
    %p59 = scmp.eq.s32.totalorder %s19, 0
    %p60 = por %p58, %p59
    %p61 = scmp.ne.s32.totalorder %s53, %s55
    %p62 = scmp.eq.s32.totalorder %s24, 1
    %p63 = por %p61, %p62
    %p64 = scmp.ne.s32.totalorder %s55, %s56
    %p65 = scmp.eq.s32.totalorder %s24, 0
    %p66 = por %p64, %p65
    %p67 = scmp.ne.s32.totalorder %s55, %s56
    %p68 = scmp.eq.s32.totalorder %s25, 1
    %p69 = por %p67, %p68
    %p71 = scmp.ne.s32.totalorder %s56, %s70
    %p72 = scmp.eq.s32.totalorder %s25, 0
    %p73 = por %p71, %p72
    %s75 = sadd.s32 %s74, 1
    %p78 = scmp.eq.s32.totalorder %s19, 1
    %p79 = scmp.ne.s32.totalorder %s74, %s76
    %p80 = scmp.eq.s32.totalorder %s19, 0
    %p81 = por %p79, %p80
    %p82 = scmp.ne.s32.totalorder %s74, %s76
    %p83 = scmp.eq.s32.totalorder %s24, 1
    %p84 = por %p82, %p83
    %p85 = scmp.ne.s32.totalorder %s76, %s77
    %p86 = scmp.eq.s32.totalorder %s24, 0
    %p87 = por %p85, %p86
    %p88 = scmp.ne.s32.totalorder %s76, %s77
    %p89 = scmp.eq.s32.totalorder %s25, 1
    %p90 = por %p88, %p89
    %p92 = scmp.ne.s32.totalorder %s77, %s91
    %p93 = scmp.eq.s32.totalorder %s25, 0
    %p94 = por %p92, %p93
    %s96 = sadd.s32 %s95, 1
    %p99 = scmp.eq.s32.totalorder %s19, 1
    %p100 = scmp.ne.s32.totalorder %s95, %s97
    %p101 = scmp.eq.s32.totalorder %s19, 0
    %p102 = por %p100, %p101
    %p103 = scmp.ne.s32.totalorder %s95, %s97
    %p104 = scmp.eq.s32.totalorder %s24, 1
    %p105 = por %p103, %p104
    %p106 = scmp.ne.s32.totalorder %s97, %s98
    %p107 = scmp.eq.s32.totalorder %s24, 0
    %p108 = por %p106, %p107
    %p109 = scmp.ne.s32.totalorder %s97, %s98
    %p110 = scmp.eq.s32.totalorder %s25, 1
    %p111 = por %p109, %p110
    %p113 = scmp.ne.s32.totalorder %s98, %s112
    %p114 = scmp.eq.s32.totalorder %s25, 0
    %p115 = por %p113, %p114
    %s117 = sadd.s32 %s116, 1
    %p120 = scmp.eq.s32.totalorder %s19, 1
    %p121 = scmp.ne.s32.totalorder %s116, %s118
    %p122 = scmp.eq.s32.totalorder %s19, 0
    %p123 = por %p121, %p122
    %p124 = scmp.ne.s32.totalorder %s116, %s118
    %p125 = scmp.eq.s32.totalorder %s24, 1
    %p126 = por %p124, %p125
    %p127 = scmp.ne.s32.totalorder %s118, %s119
    %p128 = scmp.eq.s32.totalorder %s24, 0
    %p129 = por %p127, %p128
    %p130 = scmp.ne.s32.totalorder %s118, %s119
    %p131 = scmp.eq.s32.totalorder %s25, 1
    %p132 = por %p130, %p131
    %p134 = scmp.ne.s32.totalorder %s119, %s133
    %p135 = scmp.eq.s32.totalorder %s25, 0
    %p136 = por %p134, %p135
    %s138 = sadd.s32 %s137, 1
    %p141 = scmp.eq.s32.totalorder %s19, 1
    %p142 = scmp.ne.s32.totalorder %s137, %s139
    %p143 = scmp.eq.s32.totalorder %s19, 0
    %p144 = por %p142, %p143
    %p145 = scmp.ne.s32.totalorder %s137, %s139
    %p146 = scmp.eq.s32.totalorder %s24, 1
    %p147 = por %p145, %p146
    %p148 = scmp.ne.s32.totalorder %s139, %s140
    %p149 = scmp.eq.s32.totalorder %s24, 0
    %p150 = por %p148, %p149
    %p151 = scmp.ne.s32.totalorder %s139, %s140
    %p152 = scmp.eq.s32.totalorder %s25, 1
    %p153 = por %p151, %p152
    %p155 = scmp.ne.s32.totalorder %s140, %s154
    %p156 = scmp.eq.s32.totalorder %s25, 0
    %p157 = por %p155, %p156
    %s159 = sadd.s32 %s158, 1
    %p162 = scmp.eq.s32.totalorder %s19, 1
    %p163 = scmp.ne.s32.totalorder %s158, %s160
    %p164 = scmp.eq.s32.totalorder %s19, 0
    %p165 = por %p163, %p164
    %p166 = scmp.ne.s32.totalorder %s158, %s160
    %p167 = scmp.eq.s32.totalorder %s24, 1
    %p168 = por %p166, %p167
    %p169 = scmp.ne.s32.totalorder %s160, %s161
    %p170 = scmp.eq.s32.totalorder %s24, 0
    %p171 = por %p169, %p170
    %p172 = scmp.ne.s32.totalorder %s160, %s161
    %p173 = scmp.eq.s32.totalorder %s25, 1
    %p174 = por %p172, %p173
    %p176 = scmp.ne.s32.totalorder %s161, %s175
    %p177 = scmp.eq.s32.totalorder %s25, 0
    %p178 = por %p176, %p177
    %s180 = sadd.s32 %s179, 1
    %p183 = scmp.eq.s32.totalorder %s19, 1
    %p184 = scmp.ne.s32.totalorder %s179, %s181
    %p185 = scmp.eq.s32.totalorder %s19, 0
    %p186 = por %p184, %p185
    %p187 = scmp.ne.s32.totalorder %s179, %s181
    %p188 = scmp.eq.s32.totalorder %s24, 1
    %p189 = por %p187, %p188
    %p190 = scmp.ne.s32.totalorder %s181, %s182
    %p191 = scmp.eq.s32.totalorder %s24, 0
    %p192 = por %p190, %p191
    %p193 = scmp.ne.s32.totalorder %s181, %s182
    %p194 = scmp.eq.s32.totalorder %s25, 1
    %p195 = por %p193, %p194
    %p197 = scmp.ne.s32.totalorder %s182, %s196
    %p198 = scmp.eq.s32.totalorder %s25, 0
    %p199 = por %p197, %p198
    %s201 = sadd.s32 %s200, 1
    %p204 = scmp.eq.s32.totalorder %s19, 1
    %p205 = scmp.ne.s32.totalorder %s200, %s202
    %p206 = scmp.eq.s32.totalorder %s19, 0
    %p207 = por %p205, %p206
    %p208 = scmp.ne.s32.totalorder %s200, %s202
    %p209 = scmp.eq.s32.totalorder %s24, 1
    %p210 = por %p208, %p209
    %p211 = scmp.ne.s32.totalorder %s202, %s203
    %p212 = scmp.eq.s32.totalorder %s24, 0
    %p213 = por %p211, %p212
    %p214 = scmp.ne.s32.totalorder %s202, %s203
    %p215 = scmp.eq.s32.totalorder %s25, 1
    %p216 = por %p214, %p215
    %p218 = scmp.ne.s32.totalorder %s203, %s217
    %p219 = scmp.eq.s32.totalorder %s25, 0
    %p220 = por %p218, %p219
    %s222 = sadd.s32 %s221, 1
    %p225 = scmp.eq.s32.totalorder %s19, 1
    %p226 = scmp.ne.s32.totalorder %s221, %s223
    %p227 = scmp.eq.s32.totalorder %s19, 0
    %p228 = por %p226, %p227
    %p229 = scmp.ne.s32.totalorder %s221, %s223
    %p230 = scmp.eq.s32.totalorder %s24, 1
    %p231 = por %p229, %p230
    %p232 = scmp.ne.s32.totalorder %s223, %s224
    %p233 = scmp.eq.s32.totalorder %s24, 0
    %p234 = por %p232, %p233
    %p235 = scmp.ne.s32.totalorder %s223, %s224
    %p236 = scmp.eq.s32.totalorder %s25, 1
    %p237 = por %p235, %p236
    %p239 = scmp.ne.s32.totalorder %s224, %s238
    %p240 = scmp.eq.s32.totalorder %s25, 0
    %p241 = por %p239, %p240
    %s243 = sadd.s32 %s242, 1
    %p246 = scmp.eq.s32.totalorder %s19, 1
    %p247 = scmp.ne.s32.totalorder %s242, %s244
    %p248 = scmp.eq.s32.totalorder %s19, 0
    %p249 = por %p247, %p248
    %p250 = scmp.ne.s32.totalorder %s242, %s244
    %p251 = scmp.eq.s32.totalorder %s24, 1
    %p252 = por %p250, %p251
    %p253 = scmp.ne.s32.totalorder %s244, %s245
    %p254 = scmp.eq.s32.totalorder %s24, 0
    %p255 = por %p253, %p254
    %p256 = scmp.ne.s32.totalorder %s244, %s245
    %p257 = scmp.eq.s32.totalorder %s25, 1
    %p258 = por %p256, %p257
    %p260 = scmp.ne.s32.totalorder %s245, %s259
    %p261 = scmp.eq.s32.totalorder %s25, 0
    %p262 = por %p260, %p261
    %s264 = sadd.s32 %s263, 1
    %p267 = scmp.eq.s32.totalorder %s19, 1
    %p268 = scmp.ne.s32.totalorder %s263, %s265
    %p269 = scmp.eq.s32.totalorder %s19, 0
    %p270 = por %p268, %p269
    %p271 = scmp.ne.s32.totalorder %s263, %s265
    %p272 = scmp.eq.s32.totalorder %s24, 1
    %p273 = por %p271, %p272
    %p274 = scmp.ne.s32.totalorder %s265, %s266
    %p275 = scmp.eq.s32.totalorder %s24, 0
    %p276 = por %p274, %p275
    %p277 = scmp.ne.s32.totalorder %s265, %s266
    %p278 = scmp.eq.s32.totalorder %s25, 1
    %p279 = por %p277, %p278
    %p281 = scmp.ne.s32.totalorder %s266, %s280
    %p282 = scmp.eq.s32.totalorder %s25, 0
    %p283 = por %p281, %p282
    %s285 = sadd.s32 %s284, 1
    %p288 = scmp.eq.s32.totalorder %s19, 1
    %p289 = scmp.ne.s32.totalorder %s284, %s286
    %p290 = scmp.eq.s32.totalorder %s19, 0
    %p291 = por %p289, %p290
    %p292 = scmp.ne.s32.totalorder %s284, %s286
    %p293 = scmp.eq.s32.totalorder %s24, 1
    %p294 = por %p292, %p293
    %p295 = scmp.ne.s32.totalorder %s286, %s287
    %p296 = scmp.eq.s32.totalorder %s24, 0
    %p297 = por %p295, %p296
    %p298 = scmp.ne.s32.totalorder %s286, %s287
    %p299 = scmp.eq.s32.totalorder %s25, 1
    %p300 = por %p298, %p299
    %p302 = scmp.ne.s32.totalorder %s287, %s301
    %p303 = scmp.eq.s32.totalorder %s25, 0
    %p304 = por %p302, %p303
    %s305 = ssub.s32 %s19, %s26
    %p306 = scmp.eq.s32.totalorder %s305, 0
    %s308 = sadd.s32 %s307, 1
    %s309 = scalar_select %p306, %s307, %s308
    %p312 = pneg %p306
    %p313 = scmp.eq.s32.totalorder %s19, 1
    %p314 = por %p312, %p313
    %p315 = scmp.ne.s32.totalorder %s307, %s310
    %p316 = scmp.eq.s32.totalorder %s19, 0
    %p317 = por %p315, %p316
    %p318 = scmp.ne.s32.totalorder %s307, %s310
    %p319 = scmp.eq.s32.totalorder %s24, 1
    %p320 = por %p318, %p319
    %p321 = scmp.ne.s32.totalorder %s310, %s311
    %p322 = scmp.eq.s32.totalorder %s24, 0
    %p323 = por %p321, %p322
    %p324 = scmp.ne.s32.totalorder %s310, %s311
    %p325 = scmp.eq.s32.totalorder %s25, 1
    %p326 = por %p324, %p325
    %p328 = scmp.ne.s32.totalorder %s311, %s327
    %p329 = scmp.eq.s32.totalorder %s25, 0
    %p330 = por %p328, %p329
    %p331 = scmp.le.s32.totalorder 1, %s19
    %p332 = scmp.lt.s32.totalorder %s19, 3
    %p333 = pnand %p331, %p332
    %p334 = pneg %p333
    // Predicated region
    $region9: #{xception_regressor_forward.1} parent=5 // pred_check
      _
    $region10: #{xception_regressor_forward.1} parent=5 // pred_check_branch
      %336 = sbr.rel (%p333) target = $region12
    $region11: #{xception_regressor_forward.1} parent=5 // pred_region
      %s337 = ssub.s32 %s19, 1
      // Predicated region
      $region13: #{xception_regressor_forward.1} parent=11 // pred_check
        %p338 = pneg %p66
      $region14: #{xception_regressor_forward.1} parent=11 // pred_check_branch
        %340 = sbr.rel (%p338) target = $region16
      $region15: #{xception_regressor_forward.1} parent=11 // pred_region
        _
      $region16: #{xception_regressor_forward.1} parent=11 // pred_fallthru
        _
      // Predicated region
      $region17: #{xception_regressor_forward.1} parent=11 // pred_check
        %p341 = pneg %p87
      $region18: #{xception_regressor_forward.1} parent=11 // pred_check_branch
        %343 = sbr.rel (%p341) target = $region20
      $region19: #{xception_regressor_forward.1} parent=11 // pred_region
        _
      $region20: #{xception_regressor_forward.1} parent=11 // pred_fallthru
        _
      // Predicated region
      $region21: #{xception_regressor_forward.1} parent=11 // pred_check
        %p344 = pneg %p108
      $region22: #{xception_regressor_forward.1} parent=11 // pred_check_branch
        %346 = sbr.rel (%p344) target = $region24
      $region23: #{xception_regressor_forward.1} parent=11 // pred_region
        _
      $region24: #{xception_regressor_forward.1} parent=11 // pred_fallthru
        _
      // Predicated region
      $region25: #{xception_regressor_forward.1} parent=11 // pred_check
        %p347 = pneg %p129
      $region26: #{xception_regressor_forward.1} parent=11 // pred_check_branch
        %349 = sbr.rel (%p347) target = $region28
      $region27: #{xception_regressor_forward.1} parent=11 // pred_region
        _
      $region28: #{xception_regressor_forward.1} parent=11 // pred_fallthru
        _
      // Predicated region
      $region29: #{xception_regressor_forward.1} parent=11 // pred_check
        %p350 = pneg %p150
      $region30: #{xception_regressor_forward.1} parent=11 // pred_check_branch
        %352 = sbr.rel (%p350) target = $region32
      $region31: #{xception_regressor_forward.1} parent=11 // pred_region
        _
      $region32: #{xception_regressor_forward.1} parent=11 // pred_fallthru
        _
      // Predicated region
      $region33: #{xception_regressor_forward.1} parent=11 // pred_check
        %p353 = pneg %p171
      $region34: #{xception_regressor_forward.1} parent=11 // pred_check_branch
        %355 = sbr.rel (%p353) target = $region36
      $region35: #{xception_regressor_forward.1} parent=11 // pred_region
        _
      $region36: #{xception_regressor_forward.1} parent=11 // pred_fallthru
        _
      // Predicated region
      $region37: #{xception_regressor_forward.1} parent=11 // pred_check
        %p356 = pneg %p192
      $region38: #{xception_regressor_forward.1} parent=11 // pred_check_branch
        %358 = sbr.rel (%p356) target = $region40
      $region39: #{xception_regressor_forward.1} parent=11 // pred_region
        _
      $region40: #{xception_regressor_forward.1} parent=11 // pred_fallthru
        _
      // Predicated region
      $region41: #{xception_regressor_forward.1} parent=11 // pred_check
        %p359 = pneg %p213
      $region42: #{xception_regressor_forward.1} parent=11 // pred_check_branch
        %361 = sbr.rel (%p359) target = $region44
      $region43: #{xception_regressor_forward.1} parent=11 // pred_region
        _
      $region44: #{xception_regressor_forward.1} parent=11 // pred_fallthru
        _
      // Predicated region
      $region45: #{xception_regressor_forward.1} parent=11 // pred_check
        %p362 = pneg %p234
      $region46: #{xception_regressor_forward.1} parent=11 // pred_check_branch
        %364 = sbr.rel (%p362) target = $region48
      $region47: #{xception_regressor_forward.1} parent=11 // pred_region
        _
      $region48: #{xception_regressor_forward.1} parent=11 // pred_fallthru
        _
      // Predicated region
      $region49: #{xception_regressor_forward.1} parent=11 // pred_check
        %p365 = pneg %p255
      $region50: #{xception_regressor_forward.1} parent=11 // pred_check_branch
        %367 = sbr.rel (%p365) target = $region52
      $region51: #{xception_regressor_forward.1} parent=11 // pred_region
        _
      $region52: #{xception_regressor_forward.1} parent=11 // pred_fallthru
        _
      // Predicated region
      $region53: #{xception_regressor_forward.1} parent=11 // pred_check
        %p368 = pneg %p276
      $region54: #{xception_regressor_forward.1} parent=11 // pred_check_branch
        %370 = sbr.rel (%p368) target = $region56
      $region55: #{xception_regressor_forward.1} parent=11 // pred_region
        _
      $region56: #{xception_regressor_forward.1} parent=11 // pred_fallthru
        _
      // Predicated region
      $region57: #{xception_regressor_forward.1} parent=11 // pred_check
        %p371 = pneg %p297
      $region58: #{xception_regressor_forward.1} parent=11 // pred_check_branch
        %373 = sbr.rel (%p371) target = $region60
      $region59: #{xception_regressor_forward.1} parent=11 // pred_region
        _
      $region60: #{xception_regressor_forward.1} parent=11 // pred_fallthru
        _
    $region12: #{xception_regressor_forward.1} parent=5 // pred_fallthru
      _
    %p374 = scmp.lt.s32.totalorder %s19, 2
    // Predicated region
    $region61: #{xception_regressor_forward.1} parent=5 // pred_check
      %p375 = pneg %p374
    $region62: #{xception_regressor_forward.1} parent=5 // pred_check_branch
      %377 = sbr.rel (%p375) target = $region64
    $region63: #{xception_regressor_forward.1} parent=5 // pred_region
      // Predicated region
      $region65: #{xception_regressor_forward.1} parent=63 // pred_check
        %p378 = pneg %p39
      $region66: #{xception_regressor_forward.1} parent=63 // pred_check_branch
        %380 = sbr.rel (%p378) target = $region68
      $region67: #{xception_regressor_forward.1} parent=63 // pred_region
        %p381 = scmp.lt.s32.totalorder %s19, 1
        %s382 = scalar_select %p381, %s19, 1
        %s383 = smul.addr %s382, 32
        %s384 = smul.addr %s383, 8
        %s385 = scalar_lea.vmem %s0, %s384
      $region68: #{xception_regressor_forward.1} parent=63 // pred_fallthru
        _
    $region64: #{xception_regressor_forward.1} parent=5 // pred_fallthru
      _
    %p386 = scmp.le.s32.totalorder 1, %s19
    %p387 = scmp.lt.s32.totalorder %s19, 3
    %p388 = pnand %p386, %p387
    %p389 = pneg %p388
    // Predicated region
    $region69: #{xception_regressor_forward.1} parent=5 // pred_check
      _
    $region70: #{xception_regressor_forward.1} parent=5 // pred_check_branch
      %391 = sbr.rel (%p388) target = $region72
    $region71: #{xception_regressor_forward.1} parent=5 // pred_region
      %s392 = ssub.s32 %s19, 1
      %p393 = scmp.lt.s32.totalorder %s24, 1
      %s394 = scalar_select %p393, %s24, 1
      %s395 = smul.addr %s394, 32
      %s396 = smul.addr %s395, 8
      %s397 = scalar_lea.vmem %s0, %s396
      %p398 = pneg %p45
      %p399 = pneg %p42
      %p400 = pneg %p66
      %p401 = pneg %p63
      %p402 = pneg %p87
      %p403 = pneg %p84
      %p404 = pneg %p108
      %p405 = pneg %p105
      %p406 = pneg %p129
      %p407 = pneg %p126
      %p408 = pneg %p150
      %p409 = pneg %p147
      %p410 = pneg %p171
      %p411 = pneg %p168
      %p412 = pneg %p192
      %p413 = pneg %p189
      %p414 = pneg %p213
      %p415 = pneg %p210
      %p416 = pneg %p234
      %p417 = pneg %p231
      %p418 = pneg %p255
      %p419 = pneg %p252
      %p420 = pneg %p276
      %p421 = pneg %p273
      %p422 = pneg %p297
      %p423 = pneg %p294
      %p424 = pneg %p323
      %p425 = pneg %p320
      %p426 = scmp.lt.s32.totalorder %s24, 1
      %s427 = scalar_select %p426, %s24, 1
      %s428 = smul.addr %s427, 2
      %s429 = scalar_lea.vmem %s13, %s428
      %p430 = scmp.lt.s32.totalorder %s24, 1
      %s431 = scalar_select %p430, %s24, 1
      %s432 = smul.addr %s431, 32
      %s433 = smul.addr %s432, 8
      %s434 = scalar_lea.vmem %s0, %s433
      %p435 = scmp.lt.s32.totalorder %s24, 1
      %s436 = scalar_select %p435, %s24, 1
      %s437 = smul.addr %s436, 2
      %s438 = scalar_lea.vmem %s13, %s437
      %vm439 = vcmask 253952
      %440 = vst.msk [vmem:[#allocation2] sm:$0x1] %vm439, 0.0
      %v441 = vld [vmem:[%s434] sm:$0xff]
      %v442 = vld [vmem:[%s434 + $0x8] sm:$0xff]
      %v443 = vld [vmem:[%s434 + $0x10] sm:$0xff]
      %v444 = vld [vmem:[%s434 + $0x18] sm:$0xff]
      %v445 = vld [vmem:[%s434 + $0x20] sm:$0xff]
      %v446 = vld [vmem:[%s434 + $0x28] sm:$0xff]
      %v447 = vld [vmem:[%s434 + $0x30] sm:$0xff]
      %v448 = vld [vmem:[%s434 + $0x38] sm:$0xff]
      %v449 = vld [vmem:[%s434 + $0x40] sm:$0xff]
      %v450 = vld [vmem:[%s434 + $0x48] sm:$0xff]
      %v451 = vld [vmem:[%s434 + $0x50] sm:$0xff]
      %v452 = vld [vmem:[%s434 + $0x58] sm:$0xff]
      %v453 = vld [vmem:[%s434 + $0x60] sm:$0xff]
      %v454 = vld [vmem:[%s434 + $0x68] sm:$0xff]
      %v455 = vld [vmem:[%s434 + $0x70] sm:$0xff]
      %v456 = vld [vmem:[%s434 + $0x78] sm:$0xff]
      %v457 = vld [vmem:[%s434 + $0x80] sm:$0xff]
      %v458 = vld [vmem:[%s434 + $0x88] sm:$0xff]
      %v459 = vld [vmem:[%s434 + $0x90] sm:$0xff]
      %v460 = vld [vmem:[%s434 + $0x98] sm:$0xff]
      %v461 = vld [vmem:[%s434 + $0xa0] sm:$0xff]
      %v462 = vld [vmem:[%s434 + $0xa8] sm:$0xff]
      %v463 = vld [vmem:[%s434 + $0xb0] sm:$0xff]
      %v464 = vld [vmem:[%s434 + $0xb8] sm:$0xff]
      %v465 = vld [vmem:[%s434 + $0xc0] sm:$0xff]
      %v466 = vld [vmem:[%s434 + $0xc8] sm:$0xff]
      %v467 = vld [vmem:[%s434 + $0xd0] sm:$0xff]
      %v468 = vld [vmem:[%s434 + $0xd8] sm:$0xff]
      %v469 = vld [vmem:[%s434 + $0xe0] sm:$0xff]
      %v470 = vld [vmem:[%s434 + $0xe8] sm:$0xff]
      %v471 = vld [vmem:[%s434 + $0xf0] sm:$0xff]
      %v472 = vld [vmem:[%s434 + $0xf8] sm:$0xff]
      %vm473 = vcmask 23552
      %474 = vst.msk [vmem:[#allocation2 + $0x1] sm:$0xff] %vm473, %v441
      %475 = vst.msk [vmem:[#allocation2 + $0x9] sm:$0xff] %vm473, %v442
      %476 = vst.msk [vmem:[#allocation2 + $0x11] sm:$0xff] %vm473, %v443
      %477 = vst.msk [vmem:[#allocation2 + $0x19] sm:$0xff] %vm473, %v444
      %478 = vst.msk [vmem:[#allocation2 + $0x21] sm:$0xff] %vm473, %v445
      %479 = vst.msk [vmem:[#allocation2 + $0x29] sm:$0xff] %vm473, %v446
      %480 = vst.msk [vmem:[#allocation2 + $0x31] sm:$0xff] %vm473, %v447
      %481 = vst.msk [vmem:[#allocation2 + $0x39] sm:$0xff] %vm473, %v448
      %482 = vst.msk [vmem:[#allocation2 + $0x41] sm:$0xff] %vm473, %v449
      %483 = vst.msk [vmem:[#allocation2 + $0x49] sm:$0xff] %vm473, %v450
      %484 = vst.msk [vmem:[#allocation2 + $0x51] sm:$0xff] %vm473, %v451
      %485 = vst.msk [vmem:[#allocation2 + $0x59] sm:$0xff] %vm473, %v452
      %486 = vst.msk [vmem:[#allocation2 + $0x61] sm:$0xff] %vm473, %v453
      %487 = vst.msk [vmem:[#allocation2 + $0x69] sm:$0xff] %vm473, %v454
      %488 = vst.msk [vmem:[#allocation2 + $0x71] sm:$0xff] %vm473, %v455
      %489 = vst.msk [vmem:[#allocation2 + $0x79] sm:$0xff] %vm473, %v456
      %490 = vst.msk [vmem:[#allocation2 + $0x81] sm:$0xff] %vm473, %v457
      %491 = vst.msk [vmem:[#allocation2 + $0x89] sm:$0xff] %vm473, %v458
      %492 = vst.msk [vmem:[#allocation2 + $0x91] sm:$0xff] %vm473, %v459
      %493 = vst.msk [vmem:[#allocation2 + $0x99] sm:$0xff] %vm473, %v460
      %494 = vst.msk [vmem:[#allocation2 + $0xa1] sm:$0xff] %vm473, %v461
      %495 = vst.msk [vmem:[#allocation2 + $0xa9] sm:$0xff] %vm473, %v462
      %496 = vst.msk [vmem:[#allocation2 + $0xb1] sm:$0xff] %vm473, %v463
      %497 = vst.msk [vmem:[#allocation2 + $0xb9] sm:$0xff] %vm473, %v464
      %498 = vst.msk [vmem:[#allocation2 + $0xc1] sm:$0xff] %vm473, %v465
      %499 = vst.msk [vmem:[#allocation2 + $0xc9] sm:$0xff] %vm473, %v466
      %500 = vst.msk [vmem:[#allocation2 + $0xd1] sm:$0xff] %vm473, %v467
      %501 = vst.msk [vmem:[#allocation2 + $0xd9] sm:$0xff] %vm473, %v468
      %502 = vst.msk [vmem:[#allocation2 + $0xe1] sm:$0xff] %vm473, %v469
      %503 = vst.msk [vmem:[#allocation2 + $0xe9] sm:$0xff] %vm473, %v470
      %504 = vst.msk [vmem:[#allocation2 + $0xf1] sm:$0xff] %vm473, %v471
      %505 = vst.msk [vmem:[#allocation2 + $0xf9] sm:$0xff] %vm473, %v472
      %v506 = vld [vmem:[#allocation2] ss:$2 sm:$0xff]
      %s507 = scalar_lea.vmem [#allocation2], 16
      %v508 = vld [vmem:[%s507] ss:$2 sm:$0xff]
      %s509 = scalar_lea.vmem [#allocation2], 32
      %v510 = vld [vmem:[%s509] ss:$2 sm:$0xff]
      %s511 = scalar_lea.vmem [#allocation2], 48
      %v512 = vld [vmem:[%s511] ss:$2 sm:$0xff]
      %s513 = scalar_lea.vmem [#allocation2], 64
      %v514 = vld [vmem:[%s513] ss:$2 sm:$0xff]
      %s515 = scalar_lea.vmem [#allocation2], 80
      %v516 = vld [vmem:[%s515] ss:$2 sm:$0xff]
      %s517 = scalar_lea.vmem [#allocation2], 96
      %v518 = vld [vmem:[%s517] ss:$2 sm:$0xff]
      %s519 = scalar_lea.vmem [#allocation2], 112
      %v520 = vld [vmem:[%s519] ss:$2 sm:$0xff]
      %s521 = scalar_lea.vmem [#allocation2], 128
      %v522 = vld [vmem:[%s521] ss:$2 sm:$0xff]
      %s523 = scalar_lea.vmem [#allocation2], 144
      %v524 = vld [vmem:[%s523] ss:$2 sm:$0xff]
      %s525 = scalar_lea.vmem [#allocation2], 160
      %v526 = vld [vmem:[%s525] ss:$2 sm:$0xff]
      %s527 = scalar_lea.vmem [#allocation2], 176
      %v528 = vld [vmem:[%s527] ss:$2 sm:$0xff]
      %s529 = scalar_lea.vmem [#allocation2], 192
      %v530 = vld [vmem:[%s529] ss:$2 sm:$0xff]
      %s531 = scalar_lea.vmem [#allocation2], 208
      %v532 = vld [vmem:[%s531] ss:$2 sm:$0xff]
      %s533 = scalar_lea.vmem [#allocation2], 224
      %v534 = vld [vmem:[%s533] ss:$2 sm:$0xff]
      %s535 = scalar_lea.vmem [#allocation2], 240
      %v536 = vld [vmem:[%s535] ss:$2 sm:$0xff]
      %s537 = scalar_lea.vmem [#allocation2], 1
      %v538 = vld [vmem:[%s537] ss:$2 sm:$0xff]
      %s539 = scalar_lea.vmem [#allocation2], 17
      %v540 = vld [vmem:[%s539] ss:$2 sm:$0xff]
      %s541 = scalar_lea.vmem [#allocation2], 33
      %v542 = vld [vmem:[%s541] ss:$2 sm:$0xff]
      %s543 = scalar_lea.vmem [#allocation2], 49
      %v544 = vld [vmem:[%s543] ss:$2 sm:$0xff]
      %s545 = scalar_lea.vmem [#allocation2], 65
      %v546 = vld [vmem:[%s545] ss:$2 sm:$0xff]
      %s547 = scalar_lea.vmem [#allocation2], 81
      %v548 = vld [vmem:[%s547] ss:$2 sm:$0xff]
      %s549 = scalar_lea.vmem [#allocation2], 97
      %v550 = vld [vmem:[%s549] ss:$2 sm:$0xff]
      %s551 = scalar_lea.vmem [#allocation2], 113
      %v552 = vld [vmem:[%s551] ss:$2 sm:$0xff]
      %s553 = scalar_lea.vmem [#allocation2], 129
      %v554 = vld [vmem:[%s553] ss:$2 sm:$0xff]
      %s555 = scalar_lea.vmem [#allocation2], 145
      %v556 = vld [vmem:[%s555] ss:$2 sm:$0xff]
      %s557 = scalar_lea.vmem [#allocation2], 161
      %v558 = vld [vmem:[%s557] ss:$2 sm:$0xff]
      %s559 = scalar_lea.vmem [#allocation2], 177
      %v560 = vld [vmem:[%s559] ss:$2 sm:$0xff]
      %s561 = scalar_lea.vmem [#allocation2], 193
      %v562 = vld [vmem:[%s561] ss:$2 sm:$0xff]
      %s563 = scalar_lea.vmem [#allocation2], 209
      %v564 = vld [vmem:[%s563] ss:$2 sm:$0xff]
      %s565 = scalar_lea.vmem [#allocation2], 225
      %v566 = vld [vmem:[%s565] ss:$2 sm:$0xff]
      %s567 = scalar_lea.vmem [#allocation2], 241
      %v568 = vld [vmem:[%s567] ss:$2 sm:$0xff]
      %s569 = scalar_lea.vmem [#allocation2], 2
      %v570 = vld [vmem:[%s569] ss:$2 sm:$0xff]
      %s571 = scalar_lea.vmem [#allocation2], 18
      %v572 = vld [vmem:[%s571] ss:$2 sm:$0xff]
      %s573 = scalar_lea.vmem [#allocation2], 34
      %v574 = vld [vmem:[%s573] ss:$2 sm:$0xff]
      %s575 = scalar_lea.vmem [#allocation2], 50
      %v576 = vld [vmem:[%s575] ss:$2 sm:$0xff]
      %s577 = scalar_lea.vmem [#allocation2], 66
      %v578 = vld [vmem:[%s577] ss:$2 sm:$0xff]
      %s579 = scalar_lea.vmem [#allocation2], 82
      %v580 = vld [vmem:[%s579] ss:$2 sm:$0xff]
      %s581 = scalar_lea.vmem [#allocation2], 98
      %v582 = vld [vmem:[%s581] ss:$2 sm:$0xff]
      %s583 = scalar_lea.vmem [#allocation2], 114
      %v584 = vld [vmem:[%s583] ss:$2 sm:$0xff]
      %s585 = scalar_lea.vmem [#allocation2], 130
      %v586 = vld [vmem:[%s585] ss:$2 sm:$0xff]
      %s587 = scalar_lea.vmem [#allocation2], 146
      %v588 = vld [vmem:[%s587] ss:$2 sm:$0xff]
      %s589 = scalar_lea.vmem [#allocation2], 162
      %v590 = vld [vmem:[%s589] ss:$2 sm:$0xff]
      %s591 = scalar_lea.vmem [#allocation2], 178
      %v592 = vld [vmem:[%s591] ss:$2 sm:$0xff]
      %s593 = scalar_lea.vmem [#allocation2], 194
      %v594 = vld [vmem:[%s593] ss:$2 sm:$0xff]
      %s595 = scalar_lea.vmem [#allocation2], 210
      %v596 = vld [vmem:[%s595] ss:$2 sm:$0xff]
      %s597 = scalar_lea.vmem [#allocation2], 226
      %v598 = vld [vmem:[%s597] ss:$2 sm:$0xff]
      %s599 = scalar_lea.vmem [#allocation2], 242
      %v600 = vld [vmem:[%s599] ss:$2 sm:$0xff]
      %617 = vrot.lane.b32.xlu0 %v538, 3
      %v618 = vpop.permute.xlu0 %617
      %619 = vrot.lane.b32.xlu0 %v540, 3
      %v620 = vpop.permute.xlu0 %619
      %621 = vrot.lane.b32.xlu0 %v542, 3
      %v622 = vpop.permute.xlu0 %621
      %623 = vrot.lane.b32.xlu0 %v544, 3
      %v624 = vpop.permute.xlu0 %623
      %625 = vrot.lane.b32.xlu0 %v546, 3
      %v626 = vpop.permute.xlu0 %625
      %627 = vrot.lane.b32.xlu0 %v548, 3
      %v628 = vpop.permute.xlu0 %627
      %629 = vrot.lane.b32.xlu0 %v550, 3
      %v630 = vpop.permute.xlu0 %629
      %631 = vrot.lane.b32.xlu0 %v552, 3
      %v632 = vpop.permute.xlu0 %631
      %633 = vrot.lane.b32.xlu0 %v554, 3
      %v634 = vpop.permute.xlu0 %633
      %635 = vrot.lane.b32.xlu0 %v556, 3
      %v636 = vpop.permute.xlu0 %635
      %637 = vrot.lane.b32.xlu0 %v558, 3
      %v638 = vpop.permute.xlu0 %637
      %639 = vrot.lane.b32.xlu0 %v560, 3
      %v640 = vpop.permute.xlu0 %639
      %641 = vrot.lane.b32.xlu0 %v562, 3
      %v642 = vpop.permute.xlu0 %641
      %643 = vrot.lane.b32.xlu0 %v564, 3
      %v644 = vpop.permute.xlu0 %643
      %645 = vrot.lane.b32.xlu0 %v566, 3
      %v646 = vpop.permute.xlu0 %645
      %647 = vrot.lane.b32.xlu0 %v568, 3
      %v648 = vpop.permute.xlu0 %647
      %681 = vrot.lane.b32.xlu0 %v570, 6
      %v682 = vpop.permute.xlu0 %681
      %683 = vrot.lane.b32.xlu0 %v572, 6
      %v684 = vpop.permute.xlu0 %683
      %685 = vrot.lane.b32.xlu0 %v574, 6
      %v686 = vpop.permute.xlu0 %685
      %687 = vrot.lane.b32.xlu0 %v576, 6
      %v688 = vpop.permute.xlu0 %687
      %689 = vrot.lane.b32.xlu0 %v578, 6
      %v690 = vpop.permute.xlu0 %689
      %691 = vrot.lane.b32.xlu0 %v580, 6
      %v692 = vpop.permute.xlu0 %691
      %693 = vrot.lane.b32.xlu0 %v582, 6
      %v694 = vpop.permute.xlu0 %693
      %695 = vrot.lane.b32.xlu0 %v584, 6
      %v696 = vpop.permute.xlu0 %695
      %697 = vrot.lane.b32.xlu0 %v586, 6
      %v698 = vpop.permute.xlu0 %697
      %699 = vrot.lane.b32.xlu0 %v588, 6
      %v700 = vpop.permute.xlu0 %699
      %701 = vrot.lane.b32.xlu0 %v590, 6
      %v702 = vpop.permute.xlu0 %701
      %703 = vrot.lane.b32.xlu0 %v592, 6
      %v704 = vpop.permute.xlu0 %703
      %705 = vrot.lane.b32.xlu0 %v594, 6
      %v706 = vpop.permute.xlu0 %705
      %707 = vrot.lane.b32.xlu0 %v596, 6
      %v708 = vpop.permute.xlu0 %707
      %709 = vrot.lane.b32.xlu0 %v598, 6
      %v710 = vpop.permute.xlu0 %709
      %711 = vrot.lane.b32.xlu0 %v600, 6
      %v712 = vpop.permute.xlu0 %711
      %v729 = vsel %vm473, %v506, %v618
      %v730 = vsel %vm473, %v508, %v620
      %v731 = vsel %vm473, %v510, %v622
      %v732 = vsel %vm473, %v512, %v624
      %v733 = vsel %vm473, %v514, %v626
      %v734 = vsel %vm473, %v516, %v628
      %v735 = vsel %vm473, %v518, %v630
      %v736 = vsel %vm473, %v520, %v632
      %v737 = vsel %vm473, %v522, %v634
      %v738 = vsel %vm473, %v524, %v636
      %v739 = vsel %vm473, %v526, %v638
      %v740 = vsel %vm473, %v528, %v640
      %v741 = vsel %vm473, %v530, %v642
      %v742 = vsel %vm473, %v532, %v644
      %v743 = vsel %vm473, %v534, %v646
      %v744 = vsel %vm473, %v536, %v648
      %vm745 = vcmask 48128
      %v746 = vsel %vm745, %v729, %v682
      %v747 = vsel %vm745, %v730, %v684
      %v748 = vsel %vm745, %v731, %v686
      %v749 = vsel %vm745, %v732, %v688
      %v750 = vsel %vm745, %v733, %v690
      %v751 = vsel %vm745, %v734, %v692
      %v752 = vsel %vm745, %v735, %v694
      %v753 = vsel %vm745, %v736, %v696
      %v754 = vsel %vm745, %v737, %v698
      %v755 = vsel %vm745, %v738, %v700
      %v756 = vsel %vm745, %v739, %v702
      %v757 = vsel %vm745, %v740, %v704
      %v758 = vsel %vm745, %v741, %v706
      %v759 = vsel %vm745, %v742, %v708
      %v760 = vsel %vm745, %v743, %v710
      %v761 = vsel %vm745, %v744, %v712
      %v762 = vld [vmem:[%s1] sm:$0xff]
      %v763 = vld [vmem:[%s1 + $0x8] sm:$0x1]
      %vm764 = vcmask 72704
      %v766 = vsel %vm764, %v746, 0
      %v769 = vsel %vm764, %v747, 0
      %v772 = vsel %vm764, %v748, 0
      %v775 = vsel %vm764, %v749, 0
      %v778 = vsel %vm764, %v750, 0
      %v781 = vsel %vm764, %v751, 0
      %v784 = vsel %vm764, %v752, 0
      %v787 = vsel %vm764, %v753, 0
      %v790 = vsel %vm764, %v754, 0
      %v793 = vsel %vm764, %v755, 0
      %v796 = vsel %vm764, %v756, 0
      %v799 = vsel %vm764, %v757, 0
      %v802 = vsel %vm764, %v758, 0
      %v805 = vsel %vm764, %v759, 0
      %v808 = vsel %vm764, %v760, 0
      %v811 = vsel %vm764, %v761, 0
      %vm813 = vcmask 1040384
      %v815 = vsel %vm813, %v763, 0
      %817 = vmatpush.msra.mxu0 0.0
      %818 = vmatpush.msra.mxu0 0.0
      %819 = vmatpush.msra.mxu0 0.0
      %820 = vmatpush.msra.mxu0 0.0
      %821 = vmatpush.msra.mxu0 0.0
      %822 = vmatpush.msra.mxu0 0.0
      %823 = vmatpush.msra.mxu0 0.0
      %824 = vmatpush.msra.mxu0 0.0
      %825 = vmatpush.msra.mxu0 0.0
      %826 = vmatpush.msra.mxu0 0.0
      %827 = vmatpush.msra.mxu0 0.0
      %828 = vmatpush.msra.mxu0 0.0
      %829 = vmatpush.msra.mxu0 0.0
      %830 = vmatpush.msra.mxu0 0.0
      %831 = vmatpush.msra.mxu0 %v815
      %832 = vmatpush.msra.mxu0 %v762
      %833 = vmatmul.f32.gmra.mxu0 %v766
      %v834 = vpop.f32.mrf.mxu0
      %v835 = vadd.f32 0.0, %v834
      %836 = vmatmul.f32.gmra.mxu0 %v769
      %v837 = vpop.f32.mrf.mxu0
      %v838 = vadd.f32 0.0, %v837
      %839 = vmatmul.f32.gmra.mxu0 %v772
      %v840 = vpop.f32.mrf.mxu0
      %v841 = vadd.f32 0.0, %v840
      %842 = vmatmul.f32.gmra.mxu0 %v775
      %v843 = vpop.f32.mrf.mxu0
      %v844 = vadd.f32 0.0, %v843
      %845 = vmatmul.f32.gmra.mxu0 %v778
      %v846 = vpop.f32.mrf.mxu0
      %v847 = vadd.f32 0.0, %v846
      %848 = vmatmul.f32.gmra.mxu0 %v781
      %v849 = vpop.f32.mrf.mxu0
      %v850 = vadd.f32 0.0, %v849
      %851 = vmatmul.f32.gmra.mxu0 %v784
      %v852 = vpop.f32.mrf.mxu0
      %v853 = vadd.f32 0.0, %v852
      %854 = vmatmul.f32.gmra.mxu0 %v787
      %v855 = vpop.f32.mrf.mxu0
      %v856 = vadd.f32 0.0, %v855
      %857 = vmatmul.f32.gmra.mxu0 %v790
      %v858 = vpop.f32.mrf.mxu0
      %v859 = vadd.f32 0.0, %v858
      %860 = vmatmul.f32.gmra.mxu0 %v793
      %v861 = vpop.f32.mrf.mxu0
      %v862 = vadd.f32 0.0, %v861
      %863 = vmatmul.f32.gmra.mxu0 %v796
      %v864 = vpop.f32.mrf.mxu0
      %v865 = vadd.f32 0.0, %v864
      %866 = vmatmul.f32.gmra.mxu0 %v799
      %v867 = vpop.f32.mrf.mxu0
      %v868 = vadd.f32 0.0, %v867
      %869 = vmatmul.f32.gmra.mxu0 %v802
      %v870 = vpop.f32.mrf.mxu0
      %v871 = vadd.f32 0.0, %v870
      %872 = vmatmul.f32.gmra.mxu0 %v805
      %v873 = vpop.f32.mrf.mxu0
      %v874 = vadd.f32 0.0, %v873
      %875 = vmatmul.f32.gmra.mxu0 %v808
      %v876 = vpop.f32.mrf.mxu0
      %v877 = vadd.f32 0.0, %v876
      %878 = vmatmul.f32.gmra.mxu0 %v811
      %v879 = vpop.f32.mrf.mxu0
      %v880 = vadd.f32 0.0, %v879
      %881 = vdwg.mxu0
      %v882 = vld [vmem:[%s6] sm:$0x3]
      %v883 = vperm.slane %v882, 0
      %v884 = vmul.f32 %v835, %v883
      %v885 = vmul.f32 %v838, %v883
      %v886 = vmul.f32 %v841, %v883
      %v887 = vmul.f32 %v844, %v883
      %v888 = vmul.f32 %v847, %v883
      %v889 = vmul.f32 %v850, %v883
      %v890 = vmul.f32 %v853, %v883
      %v891 = vmul.f32 %v856, %v883
      %v892 = vmul.f32 %v859, %v883
      %v893 = vmul.f32 %v862, %v883
      %v894 = vmul.f32 %v865, %v883
      %v895 = vmul.f32 %v868, %v883
      %v896 = vmul.f32 %v871, %v883
      %v897 = vmul.f32 %v874, %v883
      %v898 = vmul.f32 %v877, %v883
      %v899 = vmul.f32 %v880, %v883
      %v900 = vperm.slane %v882, 1
      %v901 = vadd.f32 %v884, %v900
      %v902 = vadd.f32 %v885, %v900
      %v903 = vadd.f32 %v886, %v900
      %v904 = vadd.f32 %v887, %v900
      %v905 = vadd.f32 %v888, %v900
      %v906 = vadd.f32 %v889, %v900
      %v907 = vadd.f32 %v890, %v900
      %v908 = vadd.f32 %v891, %v900
      %v909 = vadd.f32 %v892, %v900
      %v910 = vadd.f32 %v893, %v900
      %v911 = vadd.f32 %v894, %v900
      %v912 = vadd.f32 %v895, %v900
      %v913 = vadd.f32 %v896, %v900
      %v914 = vadd.f32 %v897, %v900
      %v915 = vadd.f32 %v898, %v900
      %v916 = vadd.f32 %v899, %v900
      %v917 = vmax.f32 %v901, 0.0
      %v918 = vmax.f32 %v902, 0.0
      %v919 = vmax.f32 %v903, 0.0
      %v920 = vmax.f32 %v904, 0.0
      %v921 = vmax.f32 %v905, 0.0
      %v922 = vmax.f32 %v906, 0.0
      %v923 = vmax.f32 %v907, 0.0
      %v924 = vmax.f32 %v908, 0.0
      %v925 = vmax.f32 %v909, 0.0
      %v926 = vmax.f32 %v910, 0.0
      %v927 = vmax.f32 %v911, 0.0
      %v928 = vmax.f32 %v912, 0.0
      %v929 = vmax.f32 %v913, 0.0
      %v930 = vmax.f32 %v914, 0.0
      %v931 = vmax.f32 %v915, 0.0
      %v932 = vmax.f32 %v916, 0.0
      %vm933 = vcmask 31744
      %934 = vst.msk [vmem:[#allocation2 + $0x1] sm:$0xff] %vm933, %v917
      %935 = vst.msk [vmem:[#allocation2 + $0x9] sm:$0xff] %vm933, %v918
      %936 = vst.msk [vmem:[#allocation2 + $0x11] sm:$0xff] %vm933, %v919
      %937 = vst.msk [vmem:[#allocation2 + $0x19] sm:$0xff] %vm933, %v920
      %938 = vst.msk [vmem:[#allocation2 + $0x21] sm:$0xff] %vm933, %v921
      %939 = vst.msk [vmem:[#allocation2 + $0x29] sm:$0xff] %vm933, %v922
      %940 = vst.msk [vmem:[#allocation2 + $0x31] sm:$0xff] %vm933, %v923
      %941 = vst.msk [vmem:[#allocation2 + $0x39] sm:$0xff] %vm933, %v924
      %942 = vst.msk [vmem:[#allocation2 + $0x41] sm:$0xff] %vm933, %v925
      %943 = vst.msk [vmem:[#allocation2 + $0x49] sm:$0xff] %vm933, %v926
      %944 = vst.msk [vmem:[#allocation2 + $0x51] sm:$0xff] %vm933, %v927
      %945 = vst.msk [vmem:[#allocation2 + $0x59] sm:$0xff] %vm933, %v928
      %946 = vst.msk [vmem:[#allocation2 + $0x61] sm:$0xff] %vm933, %v929
      %947 = vst.msk [vmem:[#allocation2 + $0x69] sm:$0xff] %vm933, %v930
      %948 = vst.msk [vmem:[#allocation2 + $0x71] sm:$0xff] %vm933, %v931
      %949 = vst.msk [vmem:[#allocation2 + $0x79] sm:$0xff] %vm933, %v932
      %v950 = vld [vmem:[#allocation2] ss:$2 sm:$0xff]
      %v951 = vld [vmem:[%s507] ss:$2 sm:$0xff]
      %v952 = vld [vmem:[%s509] ss:$2 sm:$0xff]
      %v953 = vld [vmem:[%s511] ss:$2 sm:$0xff]
      %v954 = vld [vmem:[%s513] ss:$2 sm:$0xff]
      %v955 = vld [vmem:[%s515] ss:$2 sm:$0xff]
      %v956 = vld [vmem:[%s517] ss:$2 sm:$0xff]
      %v957 = vld [vmem:[%s519] ss:$2 sm:$0xff]
      %v958 = vld [vmem:[%s537] ss:$2 sm:$0xff]
      %v959 = vld [vmem:[%s539] ss:$2 sm:$0xff]
      %v960 = vld [vmem:[%s541] ss:$2 sm:$0xff]
      %v961 = vld [vmem:[%s543] ss:$2 sm:$0xff]
      %v962 = vld [vmem:[%s545] ss:$2 sm:$0xff]
      %v963 = vld [vmem:[%s547] ss:$2 sm:$0xff]
      %v964 = vld [vmem:[%s549] ss:$2 sm:$0xff]
      %v965 = vld [vmem:[%s551] ss:$2 sm:$0xff]
      %v966 = vld [vmem:[%s569] ss:$2 sm:$0xff]
      %v967 = vld [vmem:[%s571] ss:$2 sm:$0xff]
      %v968 = vld [vmem:[%s573] ss:$2 sm:$0xff]
      %v969 = vld [vmem:[%s575] ss:$2 sm:$0xff]
      %v970 = vld [vmem:[%s577] ss:$2 sm:$0xff]
      %v971 = vld [vmem:[%s579] ss:$2 sm:$0xff]
      %v972 = vld [vmem:[%s581] ss:$2 sm:$0xff]
      %v973 = vld [vmem:[%s583] ss:$2 sm:$0xff]
      %982 = vrot.lane.b32.xlu0 %v958, 4
      %v983 = vpop.permute.xlu0 %982
      %984 = vrot.lane.b32.xlu0 %v959, 4
      %v985 = vpop.permute.xlu0 %984
      %986 = vrot.lane.b32.xlu0 %v960, 4
      %v987 = vpop.permute.xlu0 %986
      %988 = vrot.lane.b32.xlu0 %v961, 4
      %v989 = vpop.permute.xlu0 %988
      %990 = vrot.lane.b32.xlu0 %v962, 4
      %v991 = vpop.permute.xlu0 %990
      %992 = vrot.lane.b32.xlu0 %v963, 4
      %v993 = vpop.permute.xlu0 %992
      %994 = vrot.lane.b32.xlu0 %v964, 4
      %v995 = vpop.permute.xlu0 %994
      %996 = vrot.lane.b32.xlu0 %v965, 4
      %v997 = vpop.permute.xlu0 %996
      %1014 = vrot.lane.b32.xlu0 %v966, 8
      %v1015 = vpop.permute.xlu0 %1014
      %1016 = vrot.lane.b32.xlu0 %v967, 8
      %v1017 = vpop.permute.xlu0 %1016
      %1018 = vrot.lane.b32.xlu0 %v968, 8
      %v1019 = vpop.permute.xlu0 %1018
      %1020 = vrot.lane.b32.xlu0 %v969, 8
      %v1021 = vpop.permute.xlu0 %1020
      %1022 = vrot.lane.b32.xlu0 %v970, 8
      %v1023 = vpop.permute.xlu0 %1022
      %1024 = vrot.lane.b32.xlu0 %v971, 8
      %v1025 = vpop.permute.xlu0 %1024
      %1026 = vrot.lane.b32.xlu0 %v972, 8
      %v1027 = vpop.permute.xlu0 %1026
      %1028 = vrot.lane.b32.xlu0 %v973, 8
      %v1029 = vpop.permute.xlu0 %1028
      %v1038 = vsel %vm933, %v950, %v983
      %v1039 = vsel %vm933, %v951, %v985
      %v1040 = vsel %vm933, %v952, %v987
      %v1041 = vsel %vm933, %v953, %v989
      %v1042 = vsel %vm933, %v954, %v991
      %v1043 = vsel %vm933, %v955, %v993
      %v1044 = vsel %vm933, %v956, %v995
      %v1045 = vsel %vm933, %v957, %v997
      %vm1046 = vcmask 64512
      %v1047 = vsel %vm1046, %v1038, %v1015
      %v1048 = vsel %vm1046, %v1039, %v1017
      %v1049 = vsel %vm1046, %v1040, %v1019
      %v1050 = vsel %vm1046, %v1041, %v1021
      %v1051 = vsel %vm1046, %v1042, %v1023
      %v1052 = vsel %vm1046, %v1043, %v1025
      %v1053 = vsel %vm1046, %v1044, %v1027
      %v1054 = vsel %vm1046, %v1045, %v1029
      %v1055 = vld [vmem:[%s2] sm:$0xff]
      %v1056 = vld [vmem:[%s2 + $0x8] sm:$0xf]
      %vm1057 = vcmask 97280
      %v1059 = vsel %vm1057, %v1047, 0
      %v1062 = vsel %vm1057, %v1048, 0
      %v1065 = vsel %vm1057, %v1049, 0
      %v1068 = vsel %vm1057, %v1050, 0
      %v1071 = vsel %vm1057, %v1051, 0
      %v1074 = vsel %vm1057, %v1052, 0
      %v1077 = vsel %vm1057, %v1053, 0
      %v1080 = vsel %vm1057, %v1054, 0
      %vm1082 = vcmask 1043456
      %v1084 = vsel %vm1082, %v1056, 0
      %1086 = vmatpush.msra.mxu0 0.0
      %1087 = vmatpush.msra.mxu0 0.0
      %1088 = vmatpush.msra.mxu0 0.0
      %1089 = vmatpush.msra.mxu0 0.0
      %1090 = vmatpush.msra.mxu0 0.0
      %1091 = vmatpush.msra.mxu0 0.0
      %1092 = vmatpush.msra.mxu0 0.0
      %1093 = vmatpush.msra.mxu0 0.0
      %1094 = vmatpush.msra.mxu0 0.0
      %1095 = vmatpush.msra.mxu0 0.0
      %1096 = vmatpush.msra.mxu0 0.0
      %1097 = vmatpush.msra.mxu0 0.0
      %1098 = vmatpush.msra.mxu0 0.0
      %1099 = vmatpush.msra.mxu0 0.0
      %1100 = vmatpush.msra.mxu0 %v1084
      %1101 = vmatpush.msra.mxu0 %v1055
      %1102 = vmatmul.f32.gmra.mxu0 %v1059
      %v1103 = vpop.f32.mrf.mxu0
      %v1104 = vadd.f32 0.0, %v1103
      %1105 = vmatmul.f32.gmra.mxu0 %v1062
      %v1106 = vpop.f32.mrf.mxu0
      %v1107 = vadd.f32 0.0, %v1106
      %1108 = vmatmul.f32.gmra.mxu0 %v1065
      %v1109 = vpop.f32.mrf.mxu0
      %v1110 = vadd.f32 0.0, %v1109
      %1111 = vmatmul.f32.gmra.mxu0 %v1068
      %v1112 = vpop.f32.mrf.mxu0
      %v1113 = vadd.f32 0.0, %v1112
      %1114 = vmatmul.f32.gmra.mxu0 %v1071
      %v1115 = vpop.f32.mrf.mxu0
      %v1116 = vadd.f32 0.0, %v1115
      %1117 = vmatmul.f32.gmra.mxu0 %v1074
      %v1118 = vpop.f32.mrf.mxu0
      %v1119 = vadd.f32 0.0, %v1118
      %1120 = vmatmul.f32.gmra.mxu0 %v1077
      %v1121 = vpop.f32.mrf.mxu0
      %v1122 = vadd.f32 0.0, %v1121
      %1123 = vmatmul.f32.gmra.mxu0 %v1080
      %v1124 = vpop.f32.mrf.mxu0
      %v1125 = vadd.f32 0.0, %v1124
      %1126 = vdwg.mxu0
      %v1127 = vld [vmem:[%s7] sm:$0x3]
      %v1128 = vperm.slane %v1127, 0
      %v1129 = vmul.f32 %v1104, %v1128
      %v1130 = vmul.f32 %v1107, %v1128
      %v1131 = vmul.f32 %v1110, %v1128
      %v1132 = vmul.f32 %v1113, %v1128
      %v1133 = vmul.f32 %v1116, %v1128
      %v1134 = vmul.f32 %v1119, %v1128
      %v1135 = vmul.f32 %v1122, %v1128
      %v1136 = vmul.f32 %v1125, %v1128
      %v1137 = vperm.slane %v1127, 1
      %v1138 = vadd.f32 %v1129, %v1137
      %v1139 = vadd.f32 %v1130, %v1137
      %v1140 = vadd.f32 %v1131, %v1137
      %v1141 = vadd.f32 %v1132, %v1137
      %v1142 = vadd.f32 %v1133, %v1137
      %v1143 = vadd.f32 %v1134, %v1137
      %v1144 = vadd.f32 %v1135, %v1137
      %v1145 = vadd.f32 %v1136, %v1137
      %v1146 = vmax.f32 %v1138, 0.0
      %v1147 = vmax.f32 %v1139, 0.0
      %v1148 = vmax.f32 %v1140, 0.0
      %v1149 = vmax.f32 %v1141, 0.0
      %v1150 = vmax.f32 %v1142, 0.0
      %v1151 = vmax.f32 %v1143, 0.0
      %v1152 = vmax.f32 %v1144, 0.0
      %v1153 = vmax.f32 %v1145, 0.0
      %1154 = vst.msk [vmem:[#allocation2 + $0x1] sm:$0xff] %vm1046, %v1146
      %1155 = vst.msk [vmem:[#allocation2 + $0x9] sm:$0xff] %vm1046, %v1147
      %1156 = vst.msk [vmem:[#allocation2 + $0x11] sm:$0xff] %vm1046, %v1148
      %1157 = vst.msk [vmem:[#allocation2 + $0x19] sm:$0xff] %vm1046, %v1149
      %1158 = vst.msk [vmem:[#allocation2 + $0x21] sm:$0xff] %vm1046, %v1150
      %1159 = vst.msk [vmem:[#allocation2 + $0x29] sm:$0xff] %vm1046, %v1151
      %1160 = vst.msk [vmem:[#allocation2 + $0x31] sm:$0xff] %vm1046, %v1152
      %1161 = vst.msk [vmem:[#allocation2 + $0x39] sm:$0xff] %vm1046, %v1153
      %v1162 = vld [vmem:[#allocation2] ss:$2 sm:$0xff]
      %v1163 = vld [vmem:[%s507] ss:$2 sm:$0xff]
      %v1164 = vld [vmem:[%s509] ss:$2 sm:$0xff]
      %v1165 = vld [vmem:[%s511] ss:$2 sm:$0xff]
      %v1166 = vld [vmem:[%s537] ss:$2 sm:$0xff]
      %v1167 = vld [vmem:[%s539] ss:$2 sm:$0xff]
      %v1168 = vld [vmem:[%s541] ss:$2 sm:$0xff]
      %v1169 = vld [vmem:[%s543] ss:$2 sm:$0xff]
      %v1170 = vld [vmem:[%s569] ss:$2 sm:$0xff]
      %v1171 = vld [vmem:[%s571] ss:$2 sm:$0xff]
      %v1172 = vld [vmem:[%s573] ss:$2 sm:$0xff]
      %v1173 = vld [vmem:[%s575] ss:$2 sm:$0xff]
      %1178 = vrot.lane.b32.xlu0 %v1166, 8
      %v1179 = vpop.permute.xlu0 %1178
      %1180 = vrot.lane.b32.xlu0 %v1167, 8
      %v1181 = vpop.permute.xlu0 %1180
      %1182 = vrot.lane.b32.xlu0 %v1168, 8
      %v1183 = vpop.permute.xlu0 %1182
      %1184 = vrot.lane.b32.xlu0 %v1169, 8
      %v1185 = vpop.permute.xlu0 %1184
      %1194 = vrot.lane.b32.xlu0 %v1170, 16
      %v1195 = vpop.permute.xlu0 %1194
      %1196 = vrot.lane.b32.xlu0 %v1171, 16
      %v1197 = vpop.permute.xlu0 %1196
      %1198 = vrot.lane.b32.xlu0 %v1172, 16
      %v1199 = vpop.permute.xlu0 %1198
      %1200 = vrot.lane.b32.xlu0 %v1173, 16
      %v1201 = vpop.permute.xlu0 %1200
      %v1206 = vsel %vm1046, %v1162, %v1179
      %v1207 = vsel %vm1046, %v1163, %v1181
      %v1208 = vsel %vm1046, %v1164, %v1183
      %v1209 = vsel %vm1046, %v1165, %v1185
      %vm1210 = vcmask 130048
      %v1211 = vsel %vm1210, %v1206, %v1195
      %v1212 = vsel %vm1210, %v1207, %v1197
      %v1213 = vsel %vm1210, %v1208, %v1199
      %v1214 = vsel %vm1210, %v1209, %v1201
      %v1215 = vld [vmem:[%s3] sm:$0xff]
      %v1216 = vld [vmem:[%s3 + $0x8] sm:$0xff]
      %v1217 = vld [vmem:[%s3 + $0x10] sm:$0xff]
      %vm1218 = vcmask 195584
      %v1220 = vsel %vm1218, %v1211, 0
      %v1223 = vsel %vm1218, %v1212, 0
      %v1226 = vsel %vm1218, %v1213, 0
      %v1229 = vsel %vm1218, %v1214, 0
      %1231 = vmatpush.msra.mxu0 0.0
      %1232 = vmatpush.msra.mxu0 0.0
      %1233 = vmatpush.msra.mxu0 0.0
      %1234 = vmatpush.msra.mxu0 0.0
      %1235 = vmatpush.msra.mxu0 0.0
      %1236 = vmatpush.msra.mxu0 0.0
      %1237 = vmatpush.msra.mxu0 0.0
      %1238 = vmatpush.msra.mxu0 0.0
      %1239 = vmatpush.msra.mxu0 0.0
      %1240 = vmatpush.msra.mxu0 0.0
      %1241 = vmatpush.msra.mxu0 0.0
      %1242 = vmatpush.msra.mxu0 0.0
      %1243 = vmatpush.msra.mxu0 0.0
      %1244 = vmatpush.msra.mxu0 %v1217
      %1245 = vmatpush.msra.mxu0 %v1216
      %1246 = vmatpush.msra.mxu0 %v1215
      %1247 = vmatmul.f32.gmra.mxu0 %v1220
      %v1248 = vpop.f32.mrf.mxu0
      %v1249 = vadd.f32 0.0, %v1248
      %1250 = vmatmul.f32.gmra.mxu0 %v1223
      %v1251 = vpop.f32.mrf.mxu0
      %v1252 = vadd.f32 0.0, %v1251
      %1253 = vmatmul.f32.gmra.mxu0 %v1226
      %v1254 = vpop.f32.mrf.mxu0
      %v1255 = vadd.f32 0.0, %v1254
      %1256 = vmatmul.f32.gmra.mxu0 %v1229
      %v1257 = vpop.f32.mrf.mxu0
      %v1258 = vadd.f32 0.0, %v1257
      %1259 = vdwg.mxu0
      %v1260 = vld [vmem:[%s8] sm:$0x3]
      %v1261 = vperm.slane %v1260, 0
      %v1262 = vmul.f32 %v1249, %v1261
      %v1263 = vmul.f32 %v1252, %v1261
      %v1264 = vmul.f32 %v1255, %v1261
      %v1265 = vmul.f32 %v1258, %v1261
      %v1266 = vperm.slane %v1260, 1
      %v1267 = vadd.f32 %v1262, %v1266
      %v1268 = vadd.f32 %v1263, %v1266
      %v1269 = vadd.f32 %v1264, %v1266
      %v1270 = vadd.f32 %v1265, %v1266
      %v1271 = vmax.f32 %v1267, 0.0
      %v1272 = vmax.f32 %v1268, 0.0
      %v1273 = vmax.f32 %v1269, 0.0
      %v1274 = vmax.f32 %v1270, 0.0
      %1275 = vst.msk [vmem:[#allocation2 + $0x1] sm:$0xff] %vm1210, %v1271
      %1276 = vst.msk [vmem:[#allocation2 + $0x9] sm:$0xff] %vm1210, %v1272
      %1277 = vst.msk [vmem:[#allocation2 + $0x11] sm:$0xff] %vm1210, %v1273
      %1278 = vst.msk [vmem:[#allocation2 + $0x19] sm:$0xff] %vm1210, %v1274
      %v1279 = vld [vmem:[#allocation2] ss:$2 sm:$0xff]
      %v1280 = vld [vmem:[%s507] ss:$2 sm:$0xff]
      %v1281 = vld [vmem:[%s537] ss:$2 sm:$0xff]
      %v1282 = vld [vmem:[%s539] ss:$2 sm:$0xff]
      %v1283 = vld [vmem:[%s569] ss:$2 sm:$0xff]
      %v1284 = vld [vmem:[%s571] ss:$2 sm:$0xff]
      %1287 = vrot.lane.b32.xlu0 %v1281, 16
      %v1288 = vpop.permute.xlu0 %1287
      %1289 = vrot.lane.b32.xlu0 %v1282, 16
      %v1290 = vpop.permute.xlu0 %1289
      %1295 = vrot.lane.b32.xlu0 %v1283, 32
      %v1296 = vpop.permute.xlu0 %1295
      %1297 = vrot.lane.b32.xlu0 %v1284, 32
      %v1298 = vpop.permute.xlu0 %1297
      %v1301 = vsel %vm1210, %v1279, %v1288
      %v1302 = vsel %vm1210, %v1280, %v1290
      %vm1303 = vcmask 261120
      %v1304 = vsel %vm1303, %v1301, %v1296
      %v1305 = vsel %vm1303, %v1302, %v1298
      %v1306 = vld [vmem:[%s4] sm:$0xff]
      %v1307 = vld [vmem:[%s4 + $0x8] sm:$0xff]
      %v1308 = vld [vmem:[%s4 + $0x10] sm:$0xff]
      %v1309 = vld [vmem:[%s4 + $0x18] sm:$0xff]
      %v1310 = vld [vmem:[%s4 + $0x20] sm:$0xff]
      %v1311 = vld [vmem:[%s4 + $0x28] sm:$0xff]
      %vm1312 = vcmask 392192
      %v1314 = vsel %vm1312, %v1304, 0
      %v1317 = vsel %vm1312, %v1305, 0
      %1319 = vmatpush.msra.mxu0 0.0
      %1320 = vmatpush.msra.mxu0 0.0
      %1321 = vmatpush.msra.mxu0 0.0
      %1322 = vmatpush.msra.mxu0 0.0
      %1323 = vmatpush.msra.mxu0 0.0
      %1324 = vmatpush.msra.mxu0 0.0
      %1325 = vmatpush.msra.mxu0 0.0
      %1326 = vmatpush.msra.mxu0 0.0
      %1327 = vmatpush.msra.mxu0 0.0
      %1328 = vmatpush.msra.mxu0 0.0
      %1329 = vmatpush.msra.mxu0 %v1311
      %1330 = vmatpush.msra.mxu0 %v1310
      %1331 = vmatpush.msra.mxu0 %v1309
      %1332 = vmatpush.msra.mxu0 %v1308
      %1333 = vmatpush.msra.mxu0 %v1307
      %1334 = vmatpush.msra.mxu0 %v1306
      %1335 = vmatmul.f32.gmra.mxu0 %v1314
      %v1336 = vpop.f32.mrf.mxu0
      %v1337 = vadd.f32 0.0, %v1336
      %1338 = vmatmul.f32.gmra.mxu0 %v1317
      %v1339 = vpop.f32.mrf.mxu0
      %v1340 = vadd.f32 0.0, %v1339
      %1341 = vdwg.mxu0
      %v1342 = vld [vmem:[%s9] sm:$0x3]
      %v1343 = vperm.slane %v1342, 0
      %v1344 = vmul.f32 %v1337, %v1343
      %v1345 = vmul.f32 %v1340, %v1343
      %v1346 = vperm.slane %v1342, 1
      %v1347 = vadd.f32 %v1344, %v1346
      %v1348 = vadd.f32 %v1345, %v1346
      %v1349 = vmax.f32 %v1347, 0.0
      %v1350 = vmax.f32 %v1348, 0.0
      %1351 = vst.msk [vmem:[#allocation2 + $0x1] sm:$0xff] %vm1303, %v1349
      %1352 = vst.msk [vmem:[#allocation2 + $0x9] sm:$0xff] %vm1303, %v1350
      %v1353 = vld [vmem:[#allocation2] ss:$2 sm:$0xff]
      %v1354 = vld [vmem:[%s537] ss:$2 sm:$0xff]
      %v1355 = vld [vmem:[%s569] ss:$2 sm:$0xff]
      %1357 = vrot.lane.b32.xlu0 %v1354, 32
      %v1358 = vpop.permute.xlu0 %1357
      %1361 = vrot.lane.b32.xlu0 %v1355, 64
      %v1362 = vpop.permute.xlu0 %1361
      %v1364 = vsel %vm1303, %v1353, %v1358
      %vm1365 = vcmask 523264
      %v1366 = vsel %vm1365, %v1364, %v1362
      %v1367 = vld [vmem:[%s5] sm:$0xff]
      %v1368 = vld [vmem:[%s5 + $0x8] sm:$0xff]
      %v1369 = vld [vmem:[%s5 + $0x10] sm:$0xff]
      %v1370 = vld [vmem:[%s5 + $0x18] sm:$0xff]
      %v1371 = vld [vmem:[%s5 + $0x20] sm:$0xff]
      %v1372 = vld [vmem:[%s5 + $0x28] sm:$0xff]
      %v1373 = vld [vmem:[%s5 + $0x30] sm:$0xff]
      %v1374 = vld [vmem:[%s5 + $0x38] sm:$0xff]
      %v1375 = vld [vmem:[%s5 + $0x40] sm:$0xff]
      %v1376 = vld [vmem:[%s5 + $0x48] sm:$0xff]
      %v1377 = vld [vmem:[%s5 + $0x50] sm:$0xff]
      %v1378 = vld [vmem:[%s5 + $0x58] sm:$0xff]
      %vm1379 = vcmask 785408
      %v1381 = vsel %vm1379, %v1366, 0
      %1383 = vmatpush.msra.mxu0 0.0
      %1384 = vmatpush.msra.mxu0 0.0
      %1385 = vmatpush.msra.mxu0 0.0
      %1386 = vmatpush.msra.mxu0 0.0
      %1387 = vmatpush.msra.mxu0 %v1378
      %1388 = vmatpush.msra.mxu0 %v1377
      %1389 = vmatpush.msra.mxu0 %v1376
      %1390 = vmatpush.msra.mxu0 %v1375
      %1391 = vmatpush.msra.mxu0 %v1374
      %1392 = vmatpush.msra.mxu0 %v1373
      %1393 = vmatpush.msra.mxu0 %v1372
      %1394 = vmatpush.msra.mxu0 %v1371
      %1395 = vmatpush.msra.mxu0 %v1370
      %1396 = vmatpush.msra.mxu0 %v1369
      %1397 = vmatpush.msra.mxu0 %v1368
      %1398 = vmatpush.msra.mxu0 %v1367
      %1399 = vmatmul.f32.gmra.mxu0 %v1381
      %v1400 = vpop.f32.mrf.mxu0
      %v1401 = vadd.f32 0.0, %v1400
      %1402 = vdwg.mxu0
      %v1403 = vld [vmem:[%s10] sm:$0x3]
      %v1404 = vperm.slane %v1403, 0
      %v1405 = vmul.f32 %v1401, %v1404
      %v1406 = vperm.slane %v1403, 1
      %v1407 = vadd.f32 %v1405, %v1406
      %v1408 = vmax.f32 %v1407, 0.0
      %v1409 = vld [vmem:[%s11] sm:$0xff]
      %v1410 = vld [vmem:[%s11 + $0x8] sm:$0xff]
      %v1411 = vld [vmem:[%s11 + $0x10] sm:$0xff]
      %v1412 = vld [vmem:[%s11 + $0x18] sm:$0xff]
      %v1413 = vld [vmem:[%s11 + $0x20] sm:$0xff]
      %v1414 = vld [vmem:[%s11 + $0x28] sm:$0xff]
      %v1415 = vld [vmem:[%s11 + $0x30] sm:$0xff]
      %v1416 = vld [vmem:[%s11 + $0x38] sm:$0xff]
      %v1417 = vld [vmem:[%s11 + $0x40] sm:$0xff]
      %v1418 = vld [vmem:[%s11 + $0x48] sm:$0xff]
      %v1419 = vld [vmem:[%s11 + $0x50] sm:$0xff]
      %v1420 = vld [vmem:[%s11 + $0x58] sm:$0xff]
      %v1421 = vld [vmem:[%s11 + $0x60] sm:$0xff]
      %v1422 = vld [vmem:[%s11 + $0x68] sm:$0xff]
      %v1423 = vld [vmem:[%s11 + $0x70] sm:$0xff]
      %v1424 = vld [vmem:[%s11 + $0x78] sm:$0xff]
      %v1426 = vsel %vm1365, %v1408, 0
      %1428 = vmatpush.msra.mxu0 0.0
      %1429 = vmatpush.msra.mxu0 0.0
      %1430 = vmatpush.msra.mxu0 0.0
      %1431 = vmatpush.msra.mxu0 0.0
      %1432 = vmatpush.msra.mxu0 0.0
      %1433 = vmatpush.msra.mxu0 0.0
      %1434 = vmatpush.msra.mxu0 0.0
      %1435 = vmatpush.msra.mxu0 0.0
      %1436 = vmatpush.msra.mxu0 %v1423
      %1437 = vmatpush.msra.mxu0 %v1421
      %1438 = vmatpush.msra.mxu0 %v1419
      %1439 = vmatpush.msra.mxu0 %v1417
      %1440 = vmatpush.msra.mxu0 %v1415
      %1441 = vmatpush.msra.mxu0 %v1413
      %1442 = vmatpush.msra.mxu0 %v1411
      %1443 = vmatpush.msra.mxu0 %v1409
      %1444 = vmatmul.f32.gmra.mxu0 %v1426
      %v1445 = vpop.f32.mrf.mxu0
      %v1446 = vadd.f32 0.0, %v1445
      %1447 = vdwg.mxu0
      %1448 = vmatpush.msra.mxu0 0.0
      %1449 = vmatpush.msra.mxu0 0.0
      %1450 = vmatpush.msra.mxu0 0.0
      %1451 = vmatpush.msra.mxu0 0.0
      %1452 = vmatpush.msra.mxu0 0.0
      %1453 = vmatpush.msra.mxu0 0.0
      %1454 = vmatpush.msra.mxu0 0.0
      %1455 = vmatpush.msra.mxu0 0.0
      %1456 = vmatpush.msra.mxu0 %v1424
      %1457 = vmatpush.msra.mxu0 %v1422
      %1458 = vmatpush.msra.mxu0 %v1420
      %1459 = vmatpush.msra.mxu0 %v1418
      %1460 = vmatpush.msra.mxu0 %v1416
      %1461 = vmatpush.msra.mxu0 %v1414
      %1462 = vmatpush.msra.mxu0 %v1412
      %1463 = vmatpush.msra.mxu0 %v1410
      %1464 = vmatmul.f32.gmra.mxu0 %v1426
      %v1465 = vpop.f32.mrf.mxu0
      %v1466 = vadd.f32 0.0, %v1465
      %1467 = vdwg.mxu0
      %v1468 = vld [vmem:[%s12] sm:$0xff]
      %v1469 = vld [vmem:[%s12 + $0x8] sm:$0xff]
      %v1470 = vmul.f32 %v1446, %v1468
      %v1471 = vmul.f32 %v1466, %v1469
      %v1472 = vrot.slane %v1470, 4
      %v1473 = vadd.f32 %v1470, %v1472
      %v1474 = vrot.slane %v1473, 2
      %v1475 = vadd.f32 %v1473, %v1474
      %v1476 = vrot.slane %v1475, 1
      %v1477 = vadd.f32 %v1475, %v1476
      %v1478 = vrot.slane %v1471, 4
      %v1479 = vadd.f32 %v1471, %v1478
      %v1480 = vrot.slane %v1479, 2
      %v1481 = vadd.f32 %v1479, %v1480
      %v1482 = vrot.slane %v1481, 1
      %v1483 = vadd.f32 %v1481, %v1482
      %v1486 = vrot.slane %v1483, 7
      %v1487 = vsel %vm813, %v1477, %v1486
      %v1489 = vlaneseq
      %vm1490 = vcmp.ge.s32.totalorder %v1489, 0
      %vm1491 = vcmp.lt.s32.totalorder %v1489, 256
      %vm1492 = vmand %vm1490, %vm1491
      %1493 = vst.msk [vmem:[%s438] sm:$0x3] %vm1492, %v1487
      %p1494 = scmp.lt.s32.totalorder %s24, 1
      %s1495 = scalar_select %p1494, %s24, 1
      %s1496 = smul.addr %s1495, 2
      %s1497 = scalar_lea.vmem %s13, %s1496
      // Predicated region
      $region73: #{xception_regressor_forward.1} parent=71 // pred_check
        %p1498 = pneg %p320
      $region74: #{xception_regressor_forward.1} parent=71 // pred_check_branch
        %1500 = sbr.rel (%p1498) target = $region76
      $region75: #{xception_regressor_forward.1} parent=71 // pred_region
        _
      $region76: #{xception_regressor_forward.1} parent=71 // pred_fallthru
        _
    $region72: #{xception_regressor_forward.1} parent=5 // pred_fallthru
      _
    %p1501 = scmp.le.s32.totalorder 2, %s19
    // Predicated region
    $region77: #{xception_regressor_forward.1} parent=5 // pred_check
      %p1502 = pneg %p1501
    $region78: #{xception_regressor_forward.1} parent=5 // pred_check_branch
      %1504 = sbr.rel (%p1502) target = $region80
    $region79: #{xception_regressor_forward.1} parent=5 // pred_region
      %s1505 = ssub.s32 %s19, 2
      // Predicated region
      $region81: #{xception_regressor_forward.1} parent=79 // pred_check
        %p1506 = pneg %p326
      $region82: #{xception_regressor_forward.1} parent=79 // pred_check_branch
        %1508 = sbr.rel (%p1506) target = $region84
      $region83: #{xception_regressor_forward.1} parent=79 // pred_region
        %p1509 = scmp.lt.s32.totalorder %s25, 1
        %s1510 = scalar_select %p1509, %s25, 1
        %s1511 = smul.addr %s1510, 2
        %s1512 = scalar_lea.vmem %s13, %s1511
      $region84: #{xception_regressor_forward.1} parent=79 // pred_fallthru
        _
    $region80: #{xception_regressor_forward.1} parent=5 // pred_fallthru
      _
  $region6: #{xception_regressor_forward.1} parent=0 // loop_footer
    %s23 = sadd.s32 1, %s19
  $region7: #{xception_regressor_forward.1} parent=0 // loop_footer_branch
    %18 = sbr.rel target = $region3
  $region8: #{xception_regressor_forward.1} parent=0 // loop_exit
    _

</llo_original>
